<compile_context>
chip_gen: v6e
topology: v6e:2x2x1
jax: 0.10.0
libtpu: 0.0.40
codegen_flags: <defaults>
</compile_context>

<pallas_src>
import functools

import jax
import jax.numpy as jnp
from jax.experimental import pallas as pl
from jax.experimental.pallas import tpu as pltpu

NEG_SLOPE = 0.01      # nn.LeakyReLU default
K_CONV = 3            # encoder conv / pool kernel size (stride 2, pad 1)
K_DECONV = 4          # decoder ConvTranspose kernel size (stride 4, pad 2, out_pad 3)


def _leaky(x):
    return jnp.where(x > 0, x, NEG_SLOPE * x)


# ----------------------------------------------------------------------------
# Fused encoder stage: Conv1d + LeakyReLU + MaxPool1d in one kernel
# ----------------------------------------------------------------------------
def _enc_stage_kernel(xp_ref, w_ref, b_ref, o_ref, y_scr, *, lc, lp):
    """xp_ref: (L+2, Cin) zero-padded, length-major input of one batch element.
    w_ref : (3*Cin, Cout) conv weight, rows ordered k*Cin + ci (im2col tap-major).
    b_ref : (1, Cout) conv bias.
    o_ref : (Lp, Cout) pooled output.
    y_scr : (Lc, Cout) VMEM scratch holding the conv activation (never hits HBM).
    """
    # In-VMEM im2col: tap k holds padded positions 2t + k, t in [0, Lc).
    taps = [xp_ref[pl.ds(k, lc, stride=2), :] for k in range(K_CONV)]
    patches = jnp.concatenate(taps, axis=1)                          # (Lc, 3*Cin)
    y = jnp.dot(patches, w_ref[...], preferred_element_type=jnp.float32)
    y_scr[...] = _leaky(y + b_ref[...])                              # conv + LeakyReLU

    # MaxPool1d(k=3, s=2, p=1): window p covers conv positions {2p-1, 2p, 2p+1};
    # position -1 is the implicit -inf padding.
    center = y_scr[pl.ds(0, lp, stride=2), :]                        # y[2p]
    right = y_scr[pl.ds(1, lp, stride=2), :]                         # y[2p+1]
    left = jnp.concatenate(                                          # y[2p-1]
        [jnp.full((1, right.shape[1]), -jnp.inf, jnp.float32), right[: lp - 1, :]],
        axis=0)
    o_ref[...] = jnp.maximum(jnp.maximum(left, center), right)


def enc_stage(x_lm, w2, b2d):
    """Fused Conv1d(k3,s2,p1) + LeakyReLU + MaxPool1d(k3,s2,p1).

    x_lm: (B, L, Cin) length-major activations; w2: (3*Cin, Cout); b2d: (1, Cout).
    Returns (B, L // 4, Cout) length-major pooled activations.
    """
    B, L, Cin = x_lm.shape
    Cout = w2.shape[1]
    # General odd intermediate lengths would need right-edge -inf handling; this config
    # (L = 64 -> 16 -> 4) never hits it.
    assert L % 4 == 0
    lc, lp = L // 2, L // 4
    xp = jnp.pad(x_lm, ((0, 0), (1, 1), (0, 0)))    # conv zero padding along length
    kernel = functools.partial(_enc_stage_kernel, lc=lc, lp=lp)
    return pl.pallas_call(
        kernel,
        grid=(B,),
        in_specs=[
            pl.BlockSpec((None, L + 2, Cin), lambda i: (i, 0, 0)),
            pl.BlockSpec((3 * Cin, Cout), lambda i: (0, 0)),
            pl.BlockSpec((1, Cout), lambda i: (0, 0)),
        ],
        out_specs=pl.BlockSpec((None, lp, Cout), lambda i: (i, 0, 0)),
        out_shape=jax.ShapeDtypeStruct((B, lp, Cout), jnp.float32),
        scratch_shapes=[pltpu.VMEM((lc, Cout), jnp.float32)],
        compiler_params=pltpu.CompilerParams(dimension_semantics=("parallel",)),
    )(xp, w2, b2d)


# ----------------------------------------------------------------------------
# Fused FC section: Flatten -> Linear -> LeakyReLU -> Linear -> LeakyReLU
# ----------------------------------------------------------------------------
def _fc_kernel(x_ref, w1_ref, b1_ref, w2_ref, b2_ref, lat_ref, lin_ref):
    lat = _leaky(
        jnp.dot(x_ref[...], w1_ref[...], preferred_element_type=jnp.float32) + b1_ref[...])
    lat_ref[...] = lat
    lin_ref[...] = _leaky(
        jnp.dot(lat, w2_ref[...], preferred_element_type=jnp.float32) + b2_ref[...])


def fc_encoder_decoder(flat, w1, b1, w2, b2):
    """latent = leaky(flat @ w1 + b1); lin = leaky(latent @ w2 + b2) in one pallas_call;
    the (B, latent_dim) intermediate stays in VMEM."""
    B, feat = flat.shape
    latent_dim = w1.shape[1]
    return pl.pallas_call(
        _fc_kernel,
        grid=(1,),
        in_specs=[
            pl.BlockSpec((B, feat), lambda i: (0, 0)),
            pl.BlockSpec((feat, latent_dim), lambda i: (0, 0)),
            pl.BlockSpec((1, latent_dim), lambda i: (0, 0)),
            pl.BlockSpec((latent_dim, feat), lambda i: (0, 0)),
            pl.BlockSpec((1, feat), lambda i: (0, 0)),
        ],
        out_specs=(
            pl.BlockSpec((B, latent_dim), lambda i: (0, 0)),
            pl.BlockSpec((B, feat), lambda i: (0, 0)),
        ),
        out_shape=(
            jax.ShapeDtypeStruct((B, latent_dim), jnp.float32),
            jax.ShapeDtypeStruct((B, feat), jnp.float32),
        ),
    )(flat, w1, b1, w2, b2)


# ----------------------------------------------------------------------------
# Fused decoder stage: ConvTranspose1d(k4,s4,p2,op3) matmul + bias + LeakyReLU
# ----------------------------------------------------------------------------
def _deconv_kernel(x_ref, w_ref, b_ref, o_ref):
    # x_ref: (L, Cin); w_ref: (Cin, Cout*K); b_ref: (1, Cout*K) (bias tiled over k)
    y = jnp.dot(x_ref[...], w_ref[...], preferred_element_type=jnp.float32)
    o_ref[...] = _leaky(y + b_ref[...])


def deconv_lrelu(x_lm, w2, b_tiled, b_vec):
    """nn.ConvTranspose1d(kernel=4, stride=4, padding=2, output_padding=3) + LeakyReLU.

    stride == kernel_size -> contributions never overlap, so the op is one matmul per
    position (fused with bias + LeakyReLU in-kernel); crop / output_padding / (l,k)
    interleave are cheap XLA reshapes.  x_lm: (B, L, Cin) length-major.
    Returns (B, 4*L - 1, Cout) length-major.
    """
    B, L, Cin = x_lm.shape
    CoutK = w2.shape[1]
    Cout = CoutK // K_DECONV
    y = pl.pallas_call(
        _deconv_kernel,
        grid=(B,),
        in_specs=[
            pl.BlockSpec((None, L, Cin), lambda i: (i, 0, 0)),
            pl.BlockSpec((Cin, CoutK), lambda i: (0, 0)),
            pl.BlockSpec((1, CoutK), lambda i: (0, 0)),
        ],
        out_specs=pl.BlockSpec((None, L, CoutK), lambda i: (i, 0, 0)),
        out_shape=jax.ShapeDtypeStruct((B, L, CoutK), jnp.float32),
        compiler_params=pltpu.CompilerParams(dimension_semantics=("parallel",)),
    )(x_lm, w2, b_tiled)
    # y[b, l, co*K + k] == leaky(bias + full-transposed-conv value at position 4l + k).
    # PyTorch crops padding=2 positions on the left; the single output_padding column
    # receives no input contribution and therefore equals leaky(bias).
    full_lm = (y.reshape(B, L, Cout, K_DECONV)
                 .transpose(0, 1, 3, 2)
                 .reshape(B, K_DECONV * L, Cout))
    tail = jnp.broadcast_to(_leaky(b_vec).reshape(1, 1, Cout), (B, 1, Cout))
    return jnp.concatenate([full_lm[:, 2:, :], tail], axis=1)       # (B, 4L-1, Cout)


# ----------------------------------------------------------------------------
# Parameters (PyTorch layout -> precomputed kernel layouts) and forward pass
# ----------------------------------------------------------------------------
def init_params(key, n_layers, input_shape, latent_dim):
    """Returns (kernel_params, pytorch_params).

    Every weight reshape / transpose / flatten-order permutation is done ONCE here so
    the forward pass contains no per-step weight layout ops."""
    cur_len = input_shape[1]
    keys = iter(jax.random.split(key, 4 * len(n_layers) + 8))
    kp = {"enc": [], "dec": []}
    pt = {"enc": [], "dec": []}

    for i in range(len(n_layers) - 1):
        cur_len = (cur_len + 2 * 1 - K_CONV) // 2 + 1     # Conv1d(k3, s2, p1)
        cur_len = (cur_len + 2 * 1 - K_CONV) // 2 + 1     # MaxPool1d(k3, s2, p1)
        cin, cout = n_layers[i], n_layers[i + 1]
        w = 0.1 * jax.random.normal(next(keys), (cout, cin, K_CONV), jnp.float32)
        b = 0.1 * jax.random.normal(next(keys), (cout,), jnp.float32)
        pt["enc"].append((w, b))
        w_conv = jnp.transpose(w, (2, 1, 0)).reshape(K_CONV * cin, cout)  # row = k*Cin+ci
        kp["enc"].append((w_conv, b.reshape(1, cout)))

    n_last = n_layers[-1]
    feat = cur_len * n_last
    # Kernel activations are length-major, so the flattened encoder output is ordered
    # (l, c) whereas nn.Flatten on NCL is (c, l): fold that permutation into the FC
    # weights once at init.
    idx = jnp.arange(feat)
    perm = (idx % n_last) * cur_len + idx // n_last       # ours (l*C + c) -> torch (c*L + l)

    w1_pt = 0.1 * jax.random.normal(next(keys), (latent_dim, feat), jnp.float32)
    b1_pt = 0.1 * jax.random.normal(next(keys), (latent_dim,), jnp.float32)
    w2_pt = 0.1 * jax.random.normal(next(keys), (feat, latent_dim), jnp.float32)
    b2_pt = 0.1 * jax.random.normal(next(keys), (feat,), jnp.float32)
    pt.update(enc_fc_w=w1_pt, enc_fc_b=b1_pt, dec_fc_w=w2_pt, dec_fc_b=b2_pt,
              current_length=cur_len, n_last=n_last)
    kp["enc_fc_w"] = w1_pt[:, perm].T                     # (feat_lm, latent_dim)
    kp["enc_fc_b"] = b1_pt.reshape(1, latent_dim)
    kp["dec_fc_w"] = w2_pt.T[:, perm]                     # (latent_dim, feat_lm)
    kp["dec_fc_b"] = b2_pt[perm].reshape(1, feat)

    rev = n_layers[::-1]
    for i in range(len(rev) - 1):
        cin, cout = rev[i], rev[i + 1]
        w = 0.1 * jax.random.normal(next(keys), (cin, cout, K_DECONV), jnp.float32)
        b = 0.1 * jax.random.normal(next(keys), (cout,), jnp.float32)
        pt["dec"].append((w, b))
        w_dec = w.reshape(cin, cout * K_DECONV)                        # col = co*K + k
        b_tiled = jnp.repeat(b, K_DECONV).reshape(1, cout * K_DECONV)
        kp["dec"].append((w_dec, b_tiled, b))

    return kp, pt


def forward(params, x):
    """x: (B, Cin, L) in PyTorch NCL layout.  Returns (latent, decoded)."""
    B = x.shape[0]
    h = jnp.transpose(x, (0, 2, 1))                       # -> length-major (B, L, C)
    for (w_conv, b2d) in params["enc"]:
        h = enc_stage(h, w_conv, b2d)                     # conv + leaky + pool, fused
    _, cur_len, n_last = h.shape
    flat = h.reshape(B, cur_len * n_last)                 # length-major flatten
    latent, lin = fc_encoder_decoder(flat, params["enc_fc_w"], params["enc_fc_b"],
                                     params["dec_fc_w"], params["dec_fc_b"])
    h = lin.reshape(B, cur_len, n_last)                   # (B, L, C) length-major
    for (w_dec, b_tiled, b_vec) in params["dec"]:
        h = deconv_lrelu(h, w_dec, b_tiled, b_vec)        # deconv + bias + leaky, fused
    decoded = jnp.transpose(h, (0, 2, 1))                 # back to NCL
    return latent, decoded


# ----------------------------------------------------------------------------
# Pure-jnp reference (follows the PyTorch module literally; used for validation)
# ----------------------------------------------------------------------------
def _ref_conv1d(x, w, b, stride=2, pad=1):
    _, _, L = x.shape
    _, _, K = w.shape
    Lout = (L + 2 * pad - K) // stride + 1
    xp = jnp.pad(x, ((0, 0), (0, 0), (pad, pad)))
    cols = jnp.stack([xp[:, :, k: k + stride * (Lout - 1) + 1: stride] for k in range(K)], -1)
    return jnp.einsum("bilk,oik->bol", cols, w) + b[None, :, None]


def _ref_maxpool(x, k=3, stride=2, pad=1):
    _, _, L = x.shape
    Lout = (L + 2 * pad - k) // stride + 1
    xp = jnp.pad(x, ((0, 0), (0, 0), (pad, pad)), constant_values=-jnp.inf)
    wins = jnp.stack([xp[:, :, j: j + stride * (Lout - 1) + 1: stride] for j in range(k)], -1)
    return wins.max(-1)


def _ref_deconv(x, w, b, stride=4, pad=2, out_pad=3):
    B, _, L = x.shape
    _, Cout, K = w.shape
    Lout = (L - 1) * stride - 2 * pad + K + out_pad
    full = jnp.einsum("bil,iok->bolk", x, w).reshape(B, Cout, L * K)
    cropped = full[:, :, pad:]
    cropped = jnp.pad(cropped, ((0, 0), (0, 0), (0, Lout - cropped.shape[-1])))
    return _leaky(cropped + b[None, :, None])


def reference_forward(pt, x):
    h = x
    for (w, b) in pt["enc"]:
        h = _ref_maxpool(_leaky(_ref_conv1d(h, w, b)))
    B = h.shape[0]
    flat = h.reshape(B, -1)
    latent = _leaky(flat @ pt["enc_fc_w"].T + pt["enc_fc_b"])
    lin = _leaky(latent @ pt["dec_fc_w"].T + pt["dec_fc_b"])
    h = lin.reshape(B, pt["n_last"], pt["current_length"])
    for (w, b) in pt["dec"]:
        h = _ref_deconv(h, w, b)
    return latent, h


if __name__ == "__main__":
    # Config consistent with the PyTorch module: n_layers=[4, 8, 16], input length 64,
    # latent_dim=10, batch=2  ->  latent (2, 10), decoded (2, 4, 59).
    n_layers = [4, 8, 16]
    input_shape = (n_layers[0], 64)
    latent_dim = 10
    batch = 2

    key = jax.random.PRNGKey(0)
    k_params, k_x = jax.random.split(key)
    params, pt_params = init_params(k_params, n_layers, input_shape, latent_dim)
    x = jax.random.normal(k_x, (batch, input_shape[0], input_shape[1]), jnp.float32)

    fwd = jax.jit(forward)
    latent, decoded = fwd(params, x)
    latent = jax.block_until_ready(latent)
    decoded = jax.block_until_ready(decoded)

    # Shape / finiteness sanity.
    assert latent.shape == (batch, latent_dim), latent.shape
    assert decoded.shape == (batch, n_layers[0], 59), decoded.shape
    assert bool(jnp.all(jnp.isfinite(latent))) and bool(jnp.all(jnp.isfinite(decoded)))

    # Validate against a pure-jnp reference built from the PyTorch-layout parameters.
    ref_latent, ref_decoded = reference_forward(pt_params, x)
    assert jnp.allclose(latent, ref_latent, rtol=1e-2, atol=1e-2), \
        float(jnp.max(jnp.abs(latent - ref_latent)))
    assert jnp.allclose(decoded, ref_decoded, rtol=1e-2, atol=1e-2), \
        float(jnp.max(jnp.abs(decoded - ref_decoded)))

    print("KERNEL_OK")
</pallas_src>

<mosaic_0001>
module attributes {stable_mosaic.version = 11 : i64} {
  func.func @_enc_stage_kernel(%arg0: i32, %arg1: memref<1x66x4xf32, #tpu.memory_space<vmem>>, %arg2: memref<12x8xf32, #tpu.memory_space<vmem>>, %arg3: memref<1x8xf32, #tpu.memory_space<vmem>>, %arg4: memref<1x16x8xf32, #tpu.memory_space<vmem>>, %arg5: memref<32x8xf32, #tpu.memory_space<vmem>>) attributes {dimension_semantics = [#tpu.dimension_semantics<parallel>], iteration_bounds = array<i64: 2>, scalar_prefetch = 0 : i64, scratch_operands = 1 : i64, tpu.core_type = #tpu.core_type<tc>, window_params = [{transform_indices = @transform_0, window_bounds = array<i64: 1, 66, 4>}, {pipeline_mode = #tpu.pipeline_mode<synchronous>, transform_indices = @transform_1, window_bounds = array<i64: 12, 8>}, {pipeline_mode = #tpu.pipeline_mode<synchronous>, transform_indices = @transform_2, window_bounds = array<i64: 1, 8>}, {transform_indices = @transform_3, window_bounds = array<i64: 1, 16, 8>}]} {
    %c0 = arith.constant 0 : index
    %c0_0 = arith.constant 0 : index
    %c0_1 = arith.constant 0 : index
    %0 = tpu.strided_load %arg1[%c0, %c0_0, %c0_1] {strides = array<i32: 1, 2, 1>} : memref<1x66x4xf32, #tpu.memory_space<vmem>>, vector<1x32x4xf32>
    %1 = vector.shape_cast %0 : vector<1x32x4xf32> to vector<32x4xf32>
    %c0_2 = arith.constant 0 : index
    %c1 = arith.constant 1 : index
    %c0_3 = arith.constant 0 : index
    %2 = tpu.strided_load %arg1[%c0_2, %c1, %c0_3] {strides = array<i32: 1, 2, 1>} : memref<1x66x4xf32, #tpu.memory_space<vmem>>, vector<1x32x4xf32>
    %3 = vector.shape_cast %2 : vector<1x32x4xf32> to vector<32x4xf32>
    %c0_4 = arith.constant 0 : index
    %c2 = arith.constant 2 : index
    %c0_5 = arith.constant 0 : index
    %4 = tpu.strided_load %arg1[%c0_4, %c2, %c0_5] {strides = array<i32: 1, 2, 1>} : memref<1x66x4xf32, #tpu.memory_space<vmem>>, vector<1x32x4xf32>
    %5 = vector.shape_cast %4 : vector<1x32x4xf32> to vector<32x4xf32>
    %6 = tpu.concatenate %1, %3, %5 in 1 : vector<32x4xf32>, vector<32x4xf32>, vector<32x4xf32> -> vector<32x12xf32>
    %c0_6 = arith.constant 0 : index
    %c0_7 = arith.constant 0 : index
    %7 = vector.load %arg2[%c0_6, %c0_7] : memref<12x8xf32, #tpu.memory_space<vmem>>, vector<12x8xf32>
    %cst = arith.constant dense<0.000000e+00> : vector<32x8xf32>
    %8 = tpu.matmul %6, %7, %cst {dimension_numbers = #tpu.dot_dimension_numbers<[1], [0], [0], [1], [0, 0, 1, 1], [], []>} : vector<32x12xf32>, vector<12x8xf32>, vector<32x8xf32> -> vector<32x8xf32>
    %c0_8 = arith.constant 0 : index
    %c0_9 = arith.constant 0 : index
    %9 = vector.load %arg3[%c0_8, %c0_9] : memref<1x8xf32, #tpu.memory_space<vmem>>, vector<1x8xf32>
    %10 = vector.broadcast %9 : vector<1x8xf32> to vector<32x8xf32>
    %11 = arith.addf %8, %10 : vector<32x8xf32>
    %cst_10 = arith.constant 0.000000e+00 : f32
    %12 = vector.broadcast %cst_10 : f32 to vector<32x8xf32>
    %13 = arith.cmpf ogt, %11, %12 : vector<32x8xf32>
    %cst_11 = arith.constant 0.00999999977 : f32
    %14 = vector.broadcast %cst_11 : f32 to vector<32x8xf32>
    %15 = arith.mulf %14, %11 : vector<32x8xf32>
    %16 = arith.select %13, %11, %15 : vector<32x8xi1>, vector<32x8xf32>
    %c0_12 = arith.constant 0 : index
    %c0_13 = arith.constant 0 : index
    %17 = vector.load %arg5[%c0_12, %c0_13] : memref<32x8xf32, #tpu.memory_space<vmem>>, vector<32x8xf32>
    tpu.vector_store %arg5[%c0_12, %c0_13], %16 {strides = array<i32>} : memref<32x8xf32, #tpu.memory_space<vmem>>, vector<32x8xf32>,
    %c0_14 = arith.constant 0 : index
    %c0_15 = arith.constant 0 : index
    %18 = tpu.strided_load %arg5[%c0_14, %c0_15] {strides = array<i32: 2, 1>} : memref<32x8xf32, #tpu.memory_space<vmem>>, vector<16x8xf32>
    %c1_16 = arith.constant 1 : index
    %c0_17 = arith.constant 0 : index
    %19 = tpu.strided_load %arg5[%c1_16, %c0_17] {strides = array<i32: 2, 1>} : memref<32x8xf32, #tpu.memory_space<vmem>>, vector<16x8xf32>
    %cst_18 = arith.constant 0xFF800000 : f32
    %20 = vector.broadcast %cst_18 : f32 to vector<1x8xf32>
    %21 = vector.extract_strided_slice %19 {offsets = [0, 0], sizes = [15, 8], strides = [1, 1]} : vector<16x8xf32> to vector<15x8xf32>
    %22 = tpu.concatenate %20, %21 in 0 : vector<1x8xf32>, vector<15x8xf32> -> vector<16x8xf32>
    %23 = arith.maximumf %22, %18 : vector<16x8xf32>
    %24 = arith.maximumf %23, %19 : vector<16x8xf32>
    %c0_19 = arith.constant 0 : index
    %c0_20 = arith.constant 0 : index
    %c0_21 = arith.constant 0 : index
    %25 = vector.load %arg4[%c0_19, %c0_20, %c0_21] : memref<1x16x8xf32, #tpu.memory_space<vmem>>, vector<1x16x8xf32>
    %26 = vector.shape_cast %25 : vector<1x16x8xf32> to vector<16x8xf32>
    %27 = vector.shape_cast %24 : vector<16x8xf32> to vector<1x16x8xf32>
    tpu.vector_store %arg4[%c0_19, %c0_20, %c0_21], %27 {strides = array<i32>} : memref<1x16x8xf32, #tpu.memory_space<vmem>>, vector<1x16x8xf32>,
    return
  }
  func.func @transform_0(%arg0: i32) -> (i32, i32, i32) {
    %c0_i32 = arith.constant 0 : i32
    %c0_i32_0 = arith.constant 0 : i32
    %c0_i32_1 = arith.constant 0 : i32
    return %arg0, %c0_i32, %c0_i32_0 : i32, i32, i32
  }
  func.func @transform_1(%arg0: i32) -> (i32, i32) {
    %c0_i32 = arith.constant 0 : i32
    %c0_i32_0 = arith.constant 0 : i32
    %c0_i32_1 = arith.constant 0 : i32
    return %c0_i32, %c0_i32_0 : i32, i32
  }
  func.func @transform_2(%arg0: i32) -> (i32, i32) {
    %c0_i32 = arith.constant 0 : i32
    %c0_i32_0 = arith.constant 0 : i32
    %c0_i32_1 = arith.constant 0 : i32
    return %c0_i32, %c0_i32_0 : i32, i32
  }
  func.func @transform_3(%arg0: i32) -> (i32, i32, i32) {
    %c0_i32 = arith.constant 0 : i32
    %c0_i32_0 = arith.constant 0 : i32
    %c0_i32_1 = arith.constant 0 : i32
    return %arg0, %c0_i32, %c0_i32_0 : i32, i32, i32
  }
}

module attributes {stable_mosaic.version = 11 : i64} {
  func.func @_enc_stage_kernel(%arg0: i32, %arg1: memref<1x18x8xf32, #tpu.memory_space<vmem>>, %arg2: memref<24x16xf32, #tpu.memory_space<vmem>>, %arg3: memref<1x16xf32, #tpu.memory_space<vmem>>, %arg4: memref<1x4x16xf32, #tpu.memory_space<vmem>>, %arg5: memref<8x16xf32, #tpu.memory_space<vmem>>) attributes {dimension_semantics = [#tpu.dimension_semantics<parallel>], iteration_bounds = array<i64: 2>, scalar_prefetch = 0 : i64, scratch_operands = 1 : i64, tpu.core_type = #tpu.core_type<tc>, window_params = [{transform_indices = @transform_0, window_bounds = array<i64: 1, 18, 8>}, {pipeline_mode = #tpu.pipeline_mode<synchronous>, transform_indices = @transform_1, window_bounds = array<i64: 24, 16>}, {pipeline_mode = #tpu.pipeline_mode<synchronous>, transform_indices = @transform_2, window_bounds = array<i64: 1, 16>}, {transform_indices = @transform_3, window_bounds = array<i64: 1, 4, 16>}]} {
    %c0 = arith.constant 0 : index
    %c0_0 = arith.constant 0 : index
    %c0_1 = arith.constant 0 : index
    %0 = tpu.strided_load %arg1[%c0, %c0_0, %c0_1] {strides = array<i32: 1, 2, 1>} : memref<1x18x8xf32, #tpu.memory_space<vmem>>, vector<1x8x8xf32>
    %1 = vector.shape_cast %0 : vector<1x8x8xf32> to vector<8x8xf32>
    %c0_2 = arith.constant 0 : index
    %c1 = arith.constant 1 : index
    %c0_3 = arith.constant 0 : index
    %2 = tpu.strided_load %arg1[%c0_2, %c1, %c0_3] {strides = array<i32: 1, 2, 1>} : memref<1x18x8xf32, #tpu.memory_space<vmem>>, vector<1x8x8xf32>
    %3 = vector.shape_cast %2 : vector<1x8x8xf32> to vector<8x8xf32>
    %c0_4 = arith.constant 0 : index
    %c2 = arith.constant 2 : index
    %c0_5 = arith.constant 0 : index
    %4 = tpu.strided_load %arg1[%c0_4, %c2, %c0_5] {strides = array<i32: 1, 2, 1>} : memref<1x18x8xf32, #tpu.memory_space<vmem>>, vector<1x8x8xf32>
    %5 = vector.shape_cast %4 : vector<1x8x8xf32> to vector<8x8xf32>
    %6 = tpu.concatenate %1, %3, %5 in 1 : vector<8x8xf32>, vector<8x8xf32>, vector<8x8xf32> -> vector<8x24xf32>
    %c0_6 = arith.constant 0 : index
    %c0_7 = arith.constant 0 : index
    %7 = vector.load %arg2[%c0_6, %c0_7] : memref<24x16xf32, #tpu.memory_space<vmem>>, vector<24x16xf32>
    %cst = arith.constant dense<0.000000e+00> : vector<8x16xf32>
    %8 = tpu.matmul %6, %7, %cst {dimension_numbers = #tpu.dot_dimension_numbers<[1], [0], [0], [1], [0, 0, 1, 1], [], []>} : vector<8x24xf32>, vector<24x16xf32>, vector<8x16xf32> -> vector<8x16xf32>
    %c0_8 = arith.constant 0 : index
    %c0_9 = arith.constant 0 : index
    %9 = vector.load %arg3[%c0_8, %c0_9] : memref<1x16xf32, #tpu.memory_space<vmem>>, vector<1x16xf32>
    %10 = vector.broadcast %9 : vector<1x16xf32> to vector<8x16xf32>
    %11 = arith.addf %8, %10 : vector<8x16xf32>
    %cst_10 = arith.constant 0.000000e+00 : f32
    %12 = vector.broadcast %cst_10 : f32 to vector<8x16xf32>
    %13 = arith.cmpf ogt, %11, %12 : vector<8x16xf32>
    %cst_11 = arith.constant 0.00999999977 : f32
    %14 = vector.broadcast %cst_11 : f32 to vector<8x16xf32>
    %15 = arith.mulf %14, %11 : vector<8x16xf32>
    %16 = arith.select %13, %11, %15 : vector<8x16xi1>, vector<8x16xf32>
    %c0_12 = arith.constant 0 : index
    %c0_13 = arith.constant 0 : index
    %17 = vector.load %arg5[%c0_12, %c0_13] : memref<8x16xf32, #tpu.memory_space<vmem>>, vector<8x16xf32>
    tpu.vector_store %arg5[%c0_12, %c0_13], %16 {strides = array<i32>} : memref<8x16xf32, #tpu.memory_space<vmem>>, vector<8x16xf32>,
    %c0_14 = arith.constant 0 : index
    %c0_15 = arith.constant 0 : index
    %18 = tpu.strided_load %arg5[%c0_14, %c0_15] {strides = array<i32: 2, 1>} : memref<8x16xf32, #tpu.memory_space<vmem>>, vector<4x16xf32>
    %c1_16 = arith.constant 1 : index
    %c0_17 = arith.constant 0 : index
    %19 = tpu.strided_load %arg5[%c1_16, %c0_17] {strides = array<i32: 2, 1>} : memref<8x16xf32, #tpu.memory_space<vmem>>, vector<4x16xf32>
    %cst_18 = arith.constant 0xFF800000 : f32
    %20 = vector.broadcast %cst_18 : f32 to vector<1x16xf32>
    %21 = vector.extract_strided_slice %19 {offsets = [0, 0], sizes = [3, 16], strides = [1, 1]} : vector<4x16xf32> to vector<3x16xf32>
    %22 = tpu.concatenate %20, %21 in 0 : vector<1x16xf32>, vector<3x16xf32> -> vector<4x16xf32>
    %23 = arith.maximumf %22, %18 : vector<4x16xf32>
    %24 = arith.maximumf %23, %19 : vector<4x16xf32>
    %c0_19 = arith.constant 0 : index
    %c0_20 = arith.constant 0 : index
    %c0_21 = arith.constant 0 : index
    %25 = vector.load %arg4[%c0_19, %c0_20, %c0_21] : memref<1x4x16xf32, #tpu.memory_space<vmem>>, vector<1x4x16xf32>
    %26 = vector.shape_cast %25 : vector<1x4x16xf32> to vector<4x16xf32>
    %27 = vector.shape_cast %24 : vector<4x16xf32> to vector<1x4x16xf32>
    tpu.vector_store %arg4[%c0_19, %c0_20, %c0_21], %27 {strides = array<i32>} : memref<1x4x16xf32, #tpu.memory_space<vmem>>, vector<1x4x16xf32>,
    return
  }
  func.func @transform_0(%arg0: i32) -> (i32, i32, i32) {
    %c0_i32 = arith.constant 0 : i32
    %c0_i32_0 = arith.constant 0 : i32
    %c0_i32_1 = arith.constant 0 : i32
    return %arg0, %c0_i32, %c0_i32_0 : i32, i32, i32
  }
  func.func @transform_1(%arg0: i32) -> (i32, i32) {
    %c0_i32 = arith.constant 0 : i32
    %c0_i32_0 = arith.constant 0 : i32
    %c0_i32_1 = arith.constant 0 : i32
    return %c0_i32, %c0_i32_0 : i32, i32
  }
  func.func @transform_2(%arg0: i32) -> (i32, i32) {
    %c0_i32 = arith.constant 0 : i32
    %c0_i32_0 = arith.constant 0 : i32
    %c0_i32_1 = arith.constant 0 : i32
    return %c0_i32, %c0_i32_0 : i32, i32
  }
  func.func @transform_3(%arg0: i32) -> (i32, i32, i32) {
    %c0_i32 = arith.constant 0 : i32
    %c0_i32_0 = arith.constant 0 : i32
    %c0_i32_1 = arith.constant 0 : i32
    return %arg0, %c0_i32, %c0_i32_0 : i32, i32, i32
  }
}

module attributes {stable_mosaic.version = 11 : i64} {
  func.func @_fc_kernel(%arg0: i32, %arg1: memref<2x64xf32, #tpu.memory_space<vmem>>, %arg2: memref<64x10xf32, #tpu.memory_space<vmem>>, %arg3: memref<1x10xf32, #tpu.memory_space<vmem>>, %arg4: memref<10x64xf32, #tpu.memory_space<vmem>>, %arg5: memref<1x64xf32, #tpu.memory_space<vmem>>, %arg6: memref<2x10xf32, #tpu.memory_space<vmem>>, %arg7: memref<2x64xf32, #tpu.memory_space<vmem>>) attributes {dimension_semantics = [#tpu.dimension_semantics<arbitrary>], iteration_bounds = array<i64: 1>, scalar_prefetch = 0 : i64, scratch_operands = 0 : i64, tpu.core_type = #tpu.core_type<tc>, window_params = [{pipeline_mode = #tpu.pipeline_mode<synchronous>, transform_indices = @transform_0, window_bounds = array<i64: 2, 64>}, {pipeline_mode = #tpu.pipeline_mode<synchronous>, transform_indices = @transform_1, window_bounds = array<i64: 64, 10>}, {pipeline_mode = #tpu.pipeline_mode<synchronous>, transform_indices = @transform_2, window_bounds = array<i64: 1, 10>}, {pipeline_mode = #tpu.pipeline_mode<synchronous>, transform_indices = @transform_3, window_bounds = array<i64: 10, 64>}, {pipeline_mode = #tpu.pipeline_mode<synchronous>, transform_indices = @transform_4, window_bounds = array<i64: 1, 64>}, {pipeline_mode = #tpu.pipeline_mode<synchronous>, transform_indices = @transform_5, window_bounds = array<i64: 2, 10>}, {pipeline_mode = #tpu.pipeline_mode<synchronous>, transform_indices = @transform_6, window_bounds = array<i64: 2, 64>}]} {
    %c0 = arith.constant 0 : index
    %c0_0 = arith.constant 0 : index
    %0 = vector.load %arg1[%c0, %c0_0] : memref<2x64xf32, #tpu.memory_space<vmem>>, vector<2x64xf32>
    %c0_1 = arith.constant 0 : index
    %c0_2 = arith.constant 0 : index
    %1 = vector.load %arg2[%c0_1, %c0_2] : memref<64x10xf32, #tpu.memory_space<vmem>>, vector<64x10xf32>
    %cst = arith.constant dense<0.000000e+00> : vector<2x10xf32>
    %2 = tpu.matmul %0, %1, %cst {dimension_numbers = #tpu.dot_dimension_numbers<[1], [0], [0], [1], [0, 0, 1, 1], [], []>} : vector<2x64xf32>, vector<64x10xf32>, vector<2x10xf32> -> vector<2x10xf32>
    %c0_3 = arith.constant 0 : index
    %c0_4 = arith.constant 0 : index
    %3 = vector.load %arg3[%c0_3, %c0_4] : memref<1x10xf32, #tpu.memory_space<vmem>>, vector<1x10xf32>
    %4 = vector.broadcast %3 : vector<1x10xf32> to vector<2x10xf32>
    %5 = arith.addf %2, %4 : vector<2x10xf32>
    %cst_5 = arith.constant 0.000000e+00 : f32
    %6 = vector.broadcast %cst_5 : f32 to vector<2x10xf32>
    %7 = arith.cmpf ogt, %5, %6 : vector<2x10xf32>
    %cst_6 = arith.constant 0.00999999977 : f32
    %8 = vector.broadcast %cst_6 : f32 to vector<2x10xf32>
    %9 = arith.mulf %8, %5 : vector<2x10xf32>
    %10 = arith.select %7, %5, %9 : vector<2x10xi1>, vector<2x10xf32>
    %c0_7 = arith.constant 0 : index
    %c0_8 = arith.constant 0 : index
    %11 = vector.load %arg6[%c0_7, %c0_8] : memref<2x10xf32, #tpu.memory_space<vmem>>, vector<2x10xf32>
    tpu.vector_store %arg6[%c0_7, %c0_8], %10 {strides = array<i32>} : memref<2x10xf32, #tpu.memory_space<vmem>>, vector<2x10xf32>,
    %c0_9 = arith.constant 0 : index
    %c0_10 = arith.constant 0 : index
    %12 = vector.load %arg4[%c0_9, %c0_10] : memref<10x64xf32, #tpu.memory_space<vmem>>, vector<10x64xf32>
    %cst_11 = arith.constant dense<0.000000e+00> : vector<2x64xf32>
    %13 = tpu.matmul %10, %12, %cst_11 {dimension_numbers = #tpu.dot_dimension_numbers<[1], [0], [0], [1], [0, 0, 1, 1], [], []>} : vector<2x10xf32>, vector<10x64xf32>, vector<2x64xf32> -> vector<2x64xf32>
    %c0_12 = arith.constant 0 : index
    %c0_13 = arith.constant 0 : index
    %14 = vector.load %arg5[%c0_12, %c0_13] : memref<1x64xf32, #tpu.memory_space<vmem>>, vector<1x64xf32>
    %15 = vector.broadcast %14 : vector<1x64xf32> to vector<2x64xf32>
    %16 = arith.addf %13, %15 : vector<2x64xf32>
    %cst_14 = arith.constant 0.000000e+00 : f32
    %17 = vector.broadcast %cst_14 : f32 to vector<2x64xf32>
    %18 = arith.cmpf ogt, %16, %17 : vector<2x64xf32>
    %cst_15 = arith.constant 0.00999999977 : f32
    %19 = vector.broadcast %cst_15 : f32 to vector<2x64xf32>
    %20 = arith.mulf %19, %16 : vector<2x64xf32>
    %21 = arith.select %18, %16, %20 : vector<2x64xi1>, vector<2x64xf32>
    %c0_16 = arith.constant 0 : index
    %c0_17 = arith.constant 0 : index
    %22 = vector.load %arg7[%c0_16, %c0_17] : memref<2x64xf32, #tpu.memory_space<vmem>>, vector<2x64xf32>
    tpu.vector_store %arg7[%c0_16, %c0_17], %21 {strides = array<i32>} : memref<2x64xf32, #tpu.memory_space<vmem>>, vector<2x64xf32>,
    return
  }
  func.func @transform_0(%arg0: i32) -> (i32, i32) {
    %c0_i32 = arith.constant 0 : i32
    %c0_i32_0 = arith.constant 0 : i32
    %c0_i32_1 = arith.constant 0 : i32
    return %c0_i32, %c0_i32_0 : i32, i32
  }
  func.func @transform_1(%arg0: i32) -> (i32, i32) {
    %c0_i32 = arith.constant 0 : i32
    %c0_i32_0 = arith.constant 0 : i32
    %c0_i32_1 = arith.constant 0 : i32
    return %c0_i32, %c0_i32_0 : i32, i32
  }
  func.func @transform_2(%arg0: i32) -> (i32, i32) {
    %c0_i32 = arith.constant 0 : i32
    %c0_i32_0 = arith.constant 0 : i32
    %c0_i32_1 = arith.constant 0 : i32
    return %c0_i32, %c0_i32_0 : i32, i32
  }
  func.func @transform_3(%arg0: i32) -> (i32, i32) {
    %c0_i32 = arith.constant 0 : i32
    %c0_i32_0 = arith.constant 0 : i32
    %c0_i32_1 = arith.constant 0 : i32
    return %c0_i32, %c0_i32_0 : i32, i32
  }
  func.func @transform_4(%arg0: i32) -> (i32, i32) {
    %c0_i32 = arith.constant 0 : i32
    %c0_i32_0 = arith.constant 0 : i32
    %c0_i32_1 = arith.constant 0 : i32
    return %c0_i32, %c0_i32_0 : i32, i32
  }
  func.func @transform_5(%arg0: i32) -> (i32, i32) {
    %c0_i32 = arith.constant 0 : i32
    %c0_i32_0 = arith.constant 0 : i32
    %c0_i32_1 = arith.constant 0 : i32
    return %c0_i32, %c0_i32_0 : i32, i32
  }
  func.func @transform_6(%arg0: i32) -> (i32, i32) {
    %c0_i32 = arith.constant 0 : i32
    %c0_i32_0 = arith.constant 0 : i32
    %c0_i32_1 = arith.constant 0 : i32
    return %c0_i32, %c0_i32_0 : i32, i32
  }
}

module attributes {stable_mosaic.version = 11 : i64} {
  func.func @_deconv_kernel(%arg0: i32, %arg1: memref<1x4x16xf32, #tpu.memory_space<vmem>>, %arg2: memref<16x32xf32, #tpu.memory_space<vmem>>, %arg3: memref<1x32xf32, #tpu.memory_space<vmem>>, %arg4: memref<1x4x32xf32, #tpu.memory_space<vmem>>) attributes {dimension_semantics = [#tpu.dimension_semantics<parallel>], iteration_bounds = array<i64: 2>, scalar_prefetch = 0 : i64, scratch_operands = 0 : i64, tpu.core_type = #tpu.core_type<tc>, window_params = [{transform_indices = @transform_0, window_bounds = array<i64: 1, 4, 16>}, {pipeline_mode = #tpu.pipeline_mode<synchronous>, transform_indices = @transform_1, window_bounds = array<i64: 16, 32>}, {pipeline_mode = #tpu.pipeline_mode<synchronous>, transform_indices = @transform_2, window_bounds = array<i64: 1, 32>}, {transform_indices = @transform_3, window_bounds = array<i64: 1, 4, 32>}]} {
    %c0 = arith.constant 0 : index
    %c0_0 = arith.constant 0 : index
    %c0_1 = arith.constant 0 : index
    %0 = vector.load %arg1[%c0, %c0_0, %c0_1] : memref<1x4x16xf32, #tpu.memory_space<vmem>>, vector<1x4x16xf32>
    %1 = vector.shape_cast %0 : vector<1x4x16xf32> to vector<4x16xf32>
    %c0_2 = arith.constant 0 : index
    %c0_3 = arith.constant 0 : index
    %2 = vector.load %arg2[%c0_2, %c0_3] : memref<16x32xf32, #tpu.memory_space<vmem>>, vector<16x32xf32>
    %cst = arith.constant dense<0.000000e+00> : vector<4x32xf32>
    %3 = tpu.matmul %1, %2, %cst {dimension_numbers = #tpu.dot_dimension_numbers<[1], [0], [0], [1], [0, 0, 1, 1], [], []>} : vector<4x16xf32>, vector<16x32xf32>, vector<4x32xf32> -> vector<4x32xf32>
    %c0_4 = arith.constant 0 : index
    %c0_5 = arith.constant 0 : index
    %4 = vector.load %arg3[%c0_4, %c0_5] : memref<1x32xf32, #tpu.memory_space<vmem>>, vector<1x32xf32>
    %5 = vector.broadcast %4 : vector<1x32xf32> to vector<4x32xf32>
    %6 = arith.addf %3, %5 : vector<4x32xf32>
    %cst_6 = arith.constant 0.000000e+00 : f32
    %7 = vector.broadcast %cst_6 : f32 to vector<4x32xf32>
    %8 = arith.cmpf ogt, %6, %7 : vector<4x32xf32>
    %cst_7 = arith.constant 0.00999999977 : f32
    %9 = vector.broadcast %cst_7 : f32 to vector<4x32xf32>
    %10 = arith.mulf %9, %6 : vector<4x32xf32>
    %11 = arith.select %8, %6, %10 : vector<4x32xi1>, vector<4x32xf32>
    %c0_8 = arith.constant 0 : index
    %c0_9 = arith.constant 0 : index
    %c0_10 = arith.constant 0 : index
    %12 = vector.load %arg4[%c0_8, %c0_9, %c0_10] : memref<1x4x32xf32, #tpu.memory_space<vmem>>, vector<1x4x32xf32>
    %13 = vector.shape_cast %12 : vector<1x4x32xf32> to vector<4x32xf32>
    %14 = vector.shape_cast %11 : vector<4x32xf32> to vector<1x4x32xf32>
    tpu.vector_store %arg4[%c0_8, %c0_9, %c0_10], %14 {strides = array<i32>} : memref<1x4x32xf32, #tpu.memory_space<vmem>>, vector<1x4x32xf32>,
    return
  }
  func.func @transform_0(%arg0: i32) -> (i32, i32, i32) {
    %c0_i32 = arith.constant 0 : i32
    %c0_i32_0 = arith.constant 0 : i32
    %c0_i32_1 = arith.constant 0 : i32
    return %arg0, %c0_i32, %c0_i32_0 : i32, i32, i32
  }
  func.func @transform_1(%arg0: i32) -> (i32, i32) {
    %c0_i32 = arith.constant 0 : i32
    %c0_i32_0 = arith.constant 0 : i32
    %c0_i32_1 = arith.constant 0 : i32
    return %c0_i32, %c0_i32_0 : i32, i32
  }
  func.func @transform_2(%arg0: i32) -> (i32, i32) {
    %c0_i32 = arith.constant 0 : i32
    %c0_i32_0 = arith.constant 0 : i32
    %c0_i32_1 = arith.constant 0 : i32
    return %c0_i32, %c0_i32_0 : i32, i32
  }
  func.func @transform_3(%arg0: i32) -> (i32, i32, i32) {
    %c0_i32 = arith.constant 0 : i32
    %c0_i32_0 = arith.constant 0 : i32
    %c0_i32_1 = arith.constant 0 : i32
    return %arg0, %c0_i32, %c0_i32_0 : i32, i32, i32
  }
}

module attributes {stable_mosaic.version = 11 : i64} {
  func.func @_deconv_kernel(%arg0: i32, %arg1: memref<1x15x8xf32, #tpu.memory_space<vmem>>, %arg2: memref<8x16xf32, #tpu.memory_space<vmem>>, %arg3: memref<1x16xf32, #tpu.memory_space<vmem>>, %arg4: memref<1x15x16xf32, #tpu.memory_space<vmem>>) attributes {dimension_semantics = [#tpu.dimension_semantics<parallel>], iteration_bounds = array<i64: 2>, scalar_prefetch = 0 : i64, scratch_operands = 0 : i64, tpu.core_type = #tpu.core_type<tc>, window_params = [{transform_indices = @transform_0, window_bounds = array<i64: 1, 15, 8>}, {pipeline_mode = #tpu.pipeline_mode<synchronous>, transform_indices = @transform_1, window_bounds = array<i64: 8, 16>}, {pipeline_mode = #tpu.pipeline_mode<synchronous>, transform_indices = @transform_2, window_bounds = array<i64: 1, 16>}, {transform_indices = @transform_3, window_bounds = array<i64: 1, 15, 16>}]} {
    %c0 = arith.constant 0 : index
    %c0_0 = arith.constant 0 : index
    %c0_1 = arith.constant 0 : index
    %0 = vector.load %arg1[%c0, %c0_0, %c0_1] : memref<1x15x8xf32, #tpu.memory_space<vmem>>, vector<1x15x8xf32>
    %1 = vector.shape_cast %0 : vector<1x15x8xf32> to vector<15x8xf32>
    %c0_2 = arith.constant 0 : index
    %c0_3 = arith.constant 0 : index
    %2 = vector.load %arg2[%c0_2, %c0_3] : memref<8x16xf32, #tpu.memory_space<vmem>>, vector<8x16xf32>
    %cst = arith.constant dense<0.000000e+00> : vector<15x16xf32>
    %3 = tpu.matmul %1, %2, %cst {dimension_numbers = #tpu.dot_dimension_numbers<[1], [0], [0], [1], [0, 0, 1, 1], [], []>} : vector<15x8xf32>, vector<8x16xf32>, vector<15x16xf32> -> vector<15x16xf32>
    %c0_4 = arith.constant 0 : index
    %c0_5 = arith.constant 0 : index
    %4 = vector.load %arg3[%c0_4, %c0_5] : memref<1x16xf32, #tpu.memory_space<vmem>>, vector<1x16xf32>
    %5 = vector.broadcast %4 : vector<1x16xf32> to vector<15x16xf32>
    %6 = arith.addf %3, %5 : vector<15x16xf32>
    %cst_6 = arith.constant 0.000000e+00 : f32
    %7 = vector.broadcast %cst_6 : f32 to vector<15x16xf32>
    %8 = arith.cmpf ogt, %6, %7 : vector<15x16xf32>
    %cst_7 = arith.constant 0.00999999977 : f32
    %9 = vector.broadcast %cst_7 : f32 to vector<15x16xf32>
    %10 = arith.mulf %9, %6 : vector<15x16xf32>
    %11 = arith.select %8, %6, %10 : vector<15x16xi1>, vector<15x16xf32>
    %c0_8 = arith.constant 0 : index
    %c0_9 = arith.constant 0 : index
    %c0_10 = arith.constant 0 : index
    %12 = vector.load %arg4[%c0_8, %c0_9, %c0_10] : memref<1x15x16xf32, #tpu.memory_space<vmem>>, vector<1x15x16xf32>
    %13 = vector.shape_cast %12 : vector<1x15x16xf32> to vector<15x16xf32>
    %14 = vector.shape_cast %11 : vector<15x16xf32> to vector<1x15x16xf32>
    tpu.vector_store %arg4[%c0_8, %c0_9, %c0_10], %14 {strides = array<i32>} : memref<1x15x16xf32, #tpu.memory_space<vmem>>, vector<1x15x16xf32>,
    return
  }
  func.func @transform_0(%arg0: i32) -> (i32, i32, i32) {
    %c0_i32 = arith.constant 0 : i32
    %c0_i32_0 = arith.constant 0 : i32
    %c0_i32_1 = arith.constant 0 : i32
    return %arg0, %c0_i32, %c0_i32_0 : i32, i32, i32
  }
  func.func @transform_1(%arg0: i32) -> (i32, i32) {
    %c0_i32 = arith.constant 0 : i32
    %c0_i32_0 = arith.constant 0 : i32
    %c0_i32_1 = arith.constant 0 : i32
    return %c0_i32, %c0_i32_0 : i32, i32
  }
  func.func @transform_2(%arg0: i32) -> (i32, i32) {
    %c0_i32 = arith.constant 0 : i32
    %c0_i32_0 = arith.constant 0 : i32
    %c0_i32_1 = arith.constant 0 : i32
    return %c0_i32, %c0_i32_0 : i32, i32
  }
  func.func @transform_3(%arg0: i32) -> (i32, i32, i32) {
    %c0_i32 = arith.constant 0 : i32
    %c0_i32_0 = arith.constant 0 : i32
    %c0_i32_1 = arith.constant 0 : i32
    return %arg0, %c0_i32, %c0_i32_0 : i32, i32, i32
  }
}

</mosaic_0001>

<llo_original>
// kernel: forward.7
$region0: #{forward.7}
  #allocation0 [shape = 'u32[]', space=smem, size = 0x4, offset = 0x4, fixed_abs, tag = 'smem constant byte address 0x4 - core index']
  #allocation1 [shape = 'u32[144,128]{1,0:T(1,128)}', space=vmem, size = 0x12000, scoped, tag = 'internal scratch']
  %s0 = inlined_call_operand.vmem [shape: f32[2,64], index: 0, kind: input, shape index: {}]
  %s1 = inlined_call_operand.vmem [shape: f32[64,10], index: 1, kind: input, shape index: {}]
  %s2 = inlined_call_operand.vmem [shape: f32[1,10], index: 2, kind: input, shape index: {}]
  %s3 = inlined_call_operand.vmem [shape: f32[10,64], index: 3, kind: input, shape index: {}]
  %s4 = inlined_call_operand.vmem [shape: f32[1,64], index: 4, kind: input, shape index: {}]
  %s5 = inlined_call_operand.hbm [shape: f32[2,10], index: 5, kind: output, shape index: {0}]
  %s6 = inlined_call_operand.vmem [shape: f32[2,64], index: 6, kind: output, shape index: {1}]
  %7 = xla_tuple %s5, %s6
  %s8 = sld [smem:[#allocation0]]
  $region38: #{forward.7} parent=0
    _
  %s10 = ssub.s32 1, %s8
  %s11 = scalar_select 0, %s10, %s8
  $region1: #{forward.7} parent=0
    #allocation2 [shape = 'u8[1024]{0}', space=vmem, size = 0x400, scoped, tag = 'output window, operand 0, single buffered']
    #allocation3 [shape = 's32[1]{0}', space=sflag, size = 0x4, scoped, tag = 'scoped memory for forward.7']
    %12 = vsyncpa [#allocation3], 0
    // Predicated region
    $region2: #{forward.7} parent=1 // pred_check
      _
    $region3: #{forward.7} parent=1 // pred_check_branch
      %14 = sbr.rel (0) target = $region5
    $region4: #{forward.7} parent=1 // pred_region
      _
    $region5: #{forward.7} parent=1 // pred_fallthru
      _
    // Predicated region
    $region6: #{forward.7} parent=1 // pred_check
      _
    $region7: #{forward.7} parent=1 // pred_check_branch
      %16 = sbr.rel (0) target = $region9
    $region8: #{forward.7} parent=1 // pred_region
      _
    $region9: #{forward.7} parent=1 // pred_fallthru
      _
    // Predicated region
    $region10: #{forward.7} parent=1 // pred_check
      _
    $region11: #{forward.7} parent=1 // pred_check_branch
      %18 = sbr.rel (0) target = $region13
    $region12: #{forward.7} parent=1 // pred_region
      _
    $region13: #{forward.7} parent=1 // pred_fallthru
      _
    // Predicated region
    $region14: #{forward.7} parent=1 // pred_check
      _
    $region15: #{forward.7} parent=1 // pred_check_branch
      %20 = sbr.rel (0) target = $region17
    $region16: #{forward.7} parent=1 // pred_region
      _
    $region17: #{forward.7} parent=1 // pred_fallthru
      _
    // Predicated region
    $region18: #{forward.7} parent=1 // pred_check
      _
    $region19: #{forward.7} parent=1 // pred_check_branch
      %22 = sbr.rel (0) target = $region21
    $region20: #{forward.7} parent=1 // pred_region
      _
    $region21: #{forward.7} parent=1 // pred_fallthru
      _
    %v23 = vld [vmem:[%s0] sm:$0x3]
    %v24 = vld [vmem:[%s1] sm:$0xff]
    %v25 = vld [vmem:[%s1 + $0x8] sm:$0xff]
    %v26 = vld [vmem:[%s1 + $0x10] sm:$0xff]
    %v27 = vld [vmem:[%s1 + $0x18] sm:$0xff]
    %v28 = vld [vmem:[%s1 + $0x20] sm:$0xff]
    %v29 = vld [vmem:[%s1 + $0x28] sm:$0xff]
    %v30 = vld [vmem:[%s1 + $0x30] sm:$0xff]
    %v31 = vld [vmem:[%s1 + $0x38] sm:$0xff]
    %v32 = vld [vmem:[%s2] sm:$0x1]
    %v34 = vlaneseq
    %v35 = vshrl.u32 %v34, 7
    %v36 = vsub.s32 0, %v35
    %v37 = vrot.slane %v32, %v36
    %vm39 = vcmask 523264
    %v41 = vsel %vm39, %v23, 0
    %43 = vmatprep.subr.mxu0 0.0
    %44 = vmatpush1.msra.mxu0 0.0
    %45 = vmatprep.subr.mxu0 0.0
    %46 = vmatpush1.msra.mxu0 0.0
    %47 = vmatprep.subr.mxu0 0.0
    %48 = vmatpush1.msra.mxu0 0.0
    %49 = vmatprep.subr.mxu0 0.0
    %50 = vmatpush1.msra.mxu0 0.0
    %51 = vmatprep.subr.mxu0 0.0
    %52 = vmatpush1.msra.mxu0 0.0
    %53 = vmatprep.subr.mxu0 0.0
    %54 = vmatpush1.msra.mxu0 0.0
    %55 = vmatprep.subr.mxu0 0.0
    %56 = vmatpush1.msra.mxu0 0.0
    %57 = vmatprep.subr.mxu0 0.0
    %58 = vmatpush1.msra.mxu0 0.0
    %59 = vmatprep.subr.mxu0 0.0
    %60 = vmatpush1.msra.mxu0 %v31
    %61 = vmatprep.subr.mxu0 0.0
    %62 = vmatpush1.msra.mxu0 %v30
    %63 = vmatprep.subr.mxu0 0.0
    %64 = vmatpush1.msra.mxu0 %v29
    %65 = vmatprep.subr.mxu0 0.0
    %66 = vmatpush1.msra.mxu0 %v28
    %67 = vmatprep.subr.mxu0 0.0
    %68 = vmatpush1.msra.mxu0 %v27
    %69 = vmatprep.subr.mxu0 0.0
    %70 = vmatpush1.msra.mxu0 %v26
    %71 = vmatprep.subr.mxu0 0.0
    %72 = vmatpush1.msra.mxu0 %v25
    %73 = vmatprep.subr.mxu0 0.0
    %74 = vmatpush1.msra.mxu0 %v24
    %75 = vmatprep.subr.mxu0 0.0
    %76 = vmatpush2.msra.mxu0 0.0
    %77 = vmatprep.subr.mxu0 0.0
    %78 = vmatpush2.msra.mxu0 0.0
    %79 = vmatprep.subr.mxu0 0.0
    %80 = vmatpush2.msra.mxu0 0.0
    %81 = vmatprep.subr.mxu0 0.0
    %82 = vmatpush2.msra.mxu0 0.0
    %83 = vmatprep.subr.mxu0 0.0
    %84 = vmatpush2.msra.mxu0 0.0
    %85 = vmatprep.subr.mxu0 0.0
    %86 = vmatpush2.msra.mxu0 0.0
    %87 = vmatprep.subr.mxu0 0.0
    %88 = vmatpush2.msra.mxu0 0.0
    %89 = vmatprep.subr.mxu0 0.0
    %90 = vmatpush2.msra.mxu0 0.0
    %91 = vmatprep.subr.mxu0 0.0
    %92 = vmatpush2.msra.mxu0 0.0
    %93 = vmatprep.subr.mxu0 0.0
    %94 = vmatpush2.msra.mxu0 0.0
    %95 = vmatprep.subr.mxu0 0.0
    %96 = vmatpush2.msra.mxu0 0.0
    %97 = vmatprep.subr.mxu0 0.0
    %98 = vmatpush2.msra.mxu0 0.0
    %99 = vmatprep.subr.mxu0 0.0
    %100 = vmatpush2.msra.mxu0 0.0
    %101 = vmatprep.subr.mxu0 0.0
    %102 = vmatpush2.msra.mxu0 0.0
    %103 = vmatprep.subr.mxu0 0.0
    %104 = vmatpush2.msra.mxu0 0.0
    %105 = vmatprep.subr.mxu0 0.0
    %106 = vmatpush2.msra.mxu0 0.0
    %107 = vmatprep.mubr.f32.mxu0 0.0
    %108 = vmatmul.mubr.f32.gmra.mxu0 %v41
    %v109 = vpop.f32.mrf.mxu0
    %v110 = vadd.f32 %v37, %v109
    %v111 = vpop.f32.mrf.mxu0
    %112 = vdwg.mxu0
    %vm113 = vcmp.gt.f32.partialorder %v110, 0.0
    %v114 = vmul.f32 %v110, 0.01
    %v115 = vsel %vm113, %v110, %v114
    %vm116 = vcmask 74752
    %117 = vst.msk [vmem:[#allocation2] sm:$0x3] %vm116, %v115
    %v118 = vld [vmem:[%s3] sm:$0xff]
    %v119 = vld [vmem:[%s3 + $0x8] sm:$0x3]
    %v120 = vld [vmem:[%s4] sm:$0x1]
    %v122 = vlaneseq
    %v123 = vshrl.u32 %v122, 7
    %v124 = vsub.s32 0, %v123
    %v125 = vrot.slane %v120, %v124
    %vm127 = vcmask 80896
    %v129 = vsel %vm127, %v115, 0
    %vm131 = vcmask 1041408
    %v133 = vsel %vm131, %v119, 0
    %135 = vmatprep.subr.mxu0 0.0
    %136 = vmatpush1.msra.mxu0 0.0
    %137 = vmatprep.subr.mxu0 0.0
    %138 = vmatpush1.msra.mxu0 0.0
    %139 = vmatprep.subr.mxu0 0.0
    %140 = vmatpush1.msra.mxu0 0.0
    %141 = vmatprep.subr.mxu0 0.0
    %142 = vmatpush1.msra.mxu0 0.0
    %143 = vmatprep.subr.mxu0 0.0
    %144 = vmatpush1.msra.mxu0 0.0
    %145 = vmatprep.subr.mxu0 0.0
    %146 = vmatpush1.msra.mxu0 0.0
    %147 = vmatprep.subr.mxu0 0.0
    %148 = vmatpush1.msra.mxu0 0.0
    %149 = vmatprep.subr.mxu0 0.0
    %150 = vmatpush1.msra.mxu0 0.0
    %151 = vmatprep.subr.mxu0 0.0
    %152 = vmatpush1.msra.mxu0 0.0
    %153 = vmatprep.subr.mxu0 0.0
    %154 = vmatpush1.msra.mxu0 0.0
    %155 = vmatprep.subr.mxu0 0.0
    %156 = vmatpush1.msra.mxu0 0.0
    %157 = vmatprep.subr.mxu0 0.0
    %158 = vmatpush1.msra.mxu0 0.0
    %159 = vmatprep.subr.mxu0 0.0
    %160 = vmatpush1.msra.mxu0 0.0
    %161 = vmatprep.subr.mxu0 0.0
    %162 = vmatpush1.msra.mxu0 0.0
    %163 = vmatprep.subr.mxu0 0.0
    %164 = vmatpush1.msra.mxu0 %v133
    %165 = vmatprep.subr.mxu0 0.0
    %166 = vmatpush1.msra.mxu0 %v118
    %167 = vmatprep.subr.mxu0 0.0
    %168 = vmatpush2.msra.mxu0 0.0
    %169 = vmatprep.subr.mxu0 0.0
    %170 = vmatpush2.msra.mxu0 0.0
    %171 = vmatprep.subr.mxu0 0.0
    %172 = vmatpush2.msra.mxu0 0.0
    %173 = vmatprep.subr.mxu0 0.0
    %174 = vmatpush2.msra.mxu0 0.0
    %175 = vmatprep.subr.mxu0 0.0
    %176 = vmatpush2.msra.mxu0 0.0
    %177 = vmatprep.subr.mxu0 0.0
    %178 = vmatpush2.msra.mxu0 0.0
    %179 = vmatprep.subr.mxu0 0.0
    %180 = vmatpush2.msra.mxu0 0.0
    %181 = vmatprep.subr.mxu0 0.0
    %182 = vmatpush2.msra.mxu0 0.0
    %183 = vmatprep.subr.mxu0 0.0
    %184 = vmatpush2.msra.mxu0 0.0
    %185 = vmatprep.subr.mxu0 0.0
    %186 = vmatpush2.msra.mxu0 0.0
    %187 = vmatprep.subr.mxu0 0.0
    %188 = vmatpush2.msra.mxu0 0.0
    %189 = vmatprep.subr.mxu0 0.0
    %190 = vmatpush2.msra.mxu0 0.0
    %191 = vmatprep.subr.mxu0 0.0
    %192 = vmatpush2.msra.mxu0 0.0
    %193 = vmatprep.subr.mxu0 0.0
    %194 = vmatpush2.msra.mxu0 0.0
    %195 = vmatprep.subr.mxu0 0.0
    %196 = vmatpush2.msra.mxu0 0.0
    %197 = vmatprep.subr.mxu0 0.0
    %198 = vmatpush2.msra.mxu0 0.0
    %199 = vmatprep.mubr.f32.mxu0 0.0
    %200 = vmatmul.mubr.f32.gmra.mxu0 %v129
    %v201 = vpop.f32.mrf.mxu0
    %v202 = vadd.f32 %v125, %v201
    %v203 = vpop.f32.mrf.mxu0
    %204 = vdwg.mxu0
    %vm205 = vcmp.gt.f32.partialorder %v202, 0.0
    %v206 = vmul.f32 %v202, 0.01
    %v207 = vsel %vm205, %v202, %v206
    %vm208 = vcmask 517120
    %209 = vst.msk [vmem:[%s6] sm:$0x3] %vm208, %v207
    // Predicated region
    $region22: #{forward.7} parent=1 // pred_check
      _
    $region23: #{forward.7} parent=1 // pred_check_branch
      %211 = sbr.rel (0) target = $region25
    $region24: #{forward.7} parent=1 // pred_region
      %s213 = ssub.s32 32, 32
      %214 = vsyncadd [#allocation3], %s213
      %s216 = sshll.u32 [#allocation2], 4
      %s217 = int_to_ptr.vmem [resolvable:$true] %s216
      %219 = dma.vmem_to_hbm [thread:$0]  %s217, 32, %s5, [#allocation3]
    $region25: #{forward.7} parent=1 // pred_fallthru
      _
    // Predicated region
    $region26: #{forward.7} parent=1 // pred_check
      _
    $region27: #{forward.7} parent=1 // pred_check_branch
      %221 = sbr.rel (0) target = $region29
    $region28: #{forward.7} parent=1 // pred_region
      _
    $region29: #{forward.7} parent=1 // pred_fallthru
      _
    // Predicated region
    $region30: #{forward.7} parent=1 // pred_check
      _
    $region31: #{forward.7} parent=1 // pred_check_branch
      %223 = sbr.rel (0) target = $region33
    $region32: #{forward.7} parent=1 // pred_region
      %224 = dma.done [#allocation3], 32
    $region33: #{forward.7} parent=1 // pred_fallthru
      _
    // Predicated region
    $region34: #{forward.7} parent=1 // pred_check
      _
    $region35: #{forward.7} parent=1 // pred_check_branch
      %226 = sbr.rel (0) target = $region37
    $region36: #{forward.7} parent=1 // pred_region
      _
    $region37: #{forward.7} parent=1 // pred_fallthru
      _
    %227 = vsyncpa [#allocation3], 1

// kernel: forward.6
$region0: #{forward.6}
  #allocation0 [shape = 'u32[]', space=smem, size = 0x4, offset = 0x4, fixed_abs, tag = 'smem constant byte address 0x4 - core index']
  #allocation1 [shape = 'u32[144,128]{1,0:T(1,128)}', space=vmem, size = 0x12000, scoped, tag = 'internal scratch']
  #allocation2 [shape = 'f32[8,16]{1,0:T(8,128)}', space=vmem, size = 0x1000, scoped, tag = 'scratch operand']
  %s0 = inlined_call_operand.vmem [shape: f32[2,18,8], index: 0, kind: input, shape index: {}]
  %s1 = inlined_call_operand.vmem [shape: f32[24,16], index: 1, kind: input, shape index: {}]
  %s2 = inlined_call_operand.vmem [shape: f32[1,16], index: 2, kind: input, shape index: {}]
  %s3 = inlined_call_operand.vmem [shape: f32[2,4,16], index: 3, kind: output, shape index: {}]
  %s4 = sld [smem:[#allocation0]]
  $region45: #{forward.6} parent=0
    _
  %s6 = ssub.s32 1, %s4
  %s7 = scalar_select 0, %s6, %s4
  loop: start=0, step=1, limit=4
  $region2: #{forward.6} parent=0 // loop_pre_header
    _
  $region3: #{forward.6} parent=0 // loop_header
    %s9 = sphi 0, %s13
    %p10 = scmp.ge.s32.totalorder %s9, 4
    %s19 = sphi 0, %s21
    %s22 = sphi 0, %s19
    %s23 = sphi 0, %s22
    %s39 = sphi 0, %s23
    %s43 = sphi 0, %s43
    %s45 = sphi 0, %s43
    %s46 = sphi 0, %s45
    %s60 = sphi 0, %s46
    %s64 = sphi 0, %s64
    %s66 = sphi 0, %s64
    %s67 = sphi 0, %s66
    %s81 = sphi 0, %s67
    %s87 = sphi 0, %s89
    %s90 = sphi 0, %s87
    %s91 = sphi 0, %s90
    %s107 = sphi 0, %s91
  $region4: #{forward.6} parent=0 // loop_header_branch
    %12 = sbr.rel (%p10) target = $region8
  $region5: #{forward.6} parent=0 // loop_body
    %s14 = ssub.s32 %s9, 1
    %s15 = ssub.s32 %s9, 2
    %s16 = sadd.s32 %s9, 1
    %s17 = ssub.s32 %s9, %s16
    %p18 = scmp.eq.s32.totalorder %s17, 0
    %s20 = sadd.s32 %s19, 1
    %s21 = scalar_select %p18, %s19, %s20
    %p24 = pneg %p18
    %p25 = scmp.eq.s32.totalorder %s9, 1
    %p26 = por %p24, %p25
    %p27 = scmp.ne.s32.totalorder %s19, %s22
    %p28 = scmp.eq.s32.totalorder %s9, 0
    %p29 = por %p27, %p28
    %p30 = scmp.ne.s32.totalorder %s19, %s22
    %p31 = scmp.eq.s32.totalorder %s14, 1
    %p32 = por %p30, %p31
    %p33 = scmp.ne.s32.totalorder %s22, %s23
    %p34 = scmp.eq.s32.totalorder %s14, 0
    %p35 = por %p33, %p34
    %p36 = scmp.ne.s32.totalorder %s22, %s23
    %p37 = scmp.eq.s32.totalorder %s15, 1
    %p38 = por %p36, %p37
    %p40 = scmp.ne.s32.totalorder %s23, %s39
    %p41 = scmp.eq.s32.totalorder %s15, 0
    %p42 = por %p40, %p41
    %s44 = sadd.s32 %s43, 1
    %p47 = scmp.eq.s32.totalorder %s9, 1
    %p48 = scmp.ne.s32.totalorder %s43, %s45
    %p49 = scmp.eq.s32.totalorder %s9, 0
    %p50 = por %p48, %p49
    %p51 = scmp.ne.s32.totalorder %s43, %s45
    %p52 = scmp.eq.s32.totalorder %s14, 1
    %p53 = por %p51, %p52
    %p54 = scmp.ne.s32.totalorder %s45, %s46
    %p55 = scmp.eq.s32.totalorder %s14, 0
    %p56 = por %p54, %p55
    %p57 = scmp.ne.s32.totalorder %s45, %s46
    %p58 = scmp.eq.s32.totalorder %s15, 1
    %p59 = por %p57, %p58
    %p61 = scmp.ne.s32.totalorder %s46, %s60
    %p62 = scmp.eq.s32.totalorder %s15, 0
    %p63 = por %p61, %p62
    %s65 = sadd.s32 %s64, 1
    %p68 = scmp.eq.s32.totalorder %s9, 1
    %p69 = scmp.ne.s32.totalorder %s64, %s66
    %p70 = scmp.eq.s32.totalorder %s9, 0
    %p71 = por %p69, %p70
    %p72 = scmp.ne.s32.totalorder %s64, %s66
    %p73 = scmp.eq.s32.totalorder %s14, 1
    %p74 = por %p72, %p73
    %p75 = scmp.ne.s32.totalorder %s66, %s67
    %p76 = scmp.eq.s32.totalorder %s14, 0
    %p77 = por %p75, %p76
    %p78 = scmp.ne.s32.totalorder %s66, %s67
    %p79 = scmp.eq.s32.totalorder %s15, 1
    %p80 = por %p78, %p79
    %p82 = scmp.ne.s32.totalorder %s67, %s81
    %p83 = scmp.eq.s32.totalorder %s15, 0
    %p84 = por %p82, %p83
    %s85 = ssub.s32 %s9, %s16
    %p86 = scmp.eq.s32.totalorder %s85, 0
    %s88 = sadd.s32 %s87, 1
    %s89 = scalar_select %p86, %s87, %s88
    %p92 = pneg %p86
    %p93 = scmp.eq.s32.totalorder %s9, 1
    %p94 = por %p92, %p93
    %p95 = scmp.ne.s32.totalorder %s87, %s90
    %p96 = scmp.eq.s32.totalorder %s9, 0
    %p97 = por %p95, %p96
    %p98 = scmp.ne.s32.totalorder %s87, %s90
    %p99 = scmp.eq.s32.totalorder %s14, 1
    %p100 = por %p98, %p99
    %p101 = scmp.ne.s32.totalorder %s90, %s91
    %p102 = scmp.eq.s32.totalorder %s14, 0
    %p103 = por %p101, %p102
    %p104 = scmp.ne.s32.totalorder %s90, %s91
    %p105 = scmp.eq.s32.totalorder %s15, 1
    %p106 = por %p104, %p105
    %p108 = scmp.ne.s32.totalorder %s91, %s107
    %p109 = scmp.eq.s32.totalorder %s15, 0
    %p110 = por %p108, %p109
    %p111 = scmp.le.s32.totalorder 1, %s9
    %p112 = scmp.lt.s32.totalorder %s9, 3
    %p113 = pnand %p111, %p112
    %p114 = pneg %p113
    // Predicated region
    $region9: #{forward.6} parent=5 // pred_check
      _
    $region10: #{forward.6} parent=5 // pred_check_branch
      %116 = sbr.rel (%p113) target = $region12
    $region11: #{forward.6} parent=5 // pred_region
      %s117 = ssub.s32 %s9, 1
      // Predicated region
      $region13: #{forward.6} parent=11 // pred_check
        %p118 = pneg %p56
      $region14: #{forward.6} parent=11 // pred_check_branch
        %120 = sbr.rel (%p118) target = $region16
      $region15: #{forward.6} parent=11 // pred_region
        _
      $region16: #{forward.6} parent=11 // pred_fallthru
        _
      // Predicated region
      $region17: #{forward.6} parent=11 // pred_check
        %p121 = pneg %p77
      $region18: #{forward.6} parent=11 // pred_check_branch
        %123 = sbr.rel (%p121) target = $region20
      $region19: #{forward.6} parent=11 // pred_region
        _
      $region20: #{forward.6} parent=11 // pred_fallthru
        _
    $region12: #{forward.6} parent=5 // pred_fallthru
      _
    %p124 = scmp.lt.s32.totalorder %s9, 2
    // Predicated region
    $region21: #{forward.6} parent=5 // pred_check
      %p125 = pneg %p124
    $region22: #{forward.6} parent=5 // pred_check_branch
      %127 = sbr.rel (%p125) target = $region24
    $region23: #{forward.6} parent=5 // pred_region
      // Predicated region
      $region25: #{forward.6} parent=23 // pred_check
        %p128 = pneg %p29
      $region26: #{forward.6} parent=23 // pred_check_branch
        %130 = sbr.rel (%p128) target = $region28
      $region27: #{forward.6} parent=23 // pred_region
        %p131 = scmp.lt.s32.totalorder %s9, 1
        %s132 = scalar_select %p131, %s9, 1
        %s133 = smul.addr %s132, 3
        %s134 = smul.addr %s133, 8
        %s135 = scalar_lea.vmem %s0, %s134
      $region28: #{forward.6} parent=23 // pred_fallthru
        _
    $region24: #{forward.6} parent=5 // pred_fallthru
      _
    %p136 = scmp.le.s32.totalorder 1, %s9
    %p137 = scmp.lt.s32.totalorder %s9, 3
    %p138 = pnand %p136, %p137
    %p139 = pneg %p138
    // Predicated region
    $region29: #{forward.6} parent=5 // pred_check
      _
    $region30: #{forward.6} parent=5 // pred_check_branch
      %141 = sbr.rel (%p138) target = $region32
    $region31: #{forward.6} parent=5 // pred_region
      %s142 = ssub.s32 %s9, 1
      %p143 = scmp.lt.s32.totalorder %s14, 1
      %s144 = scalar_select %p143, %s14, 1
      %s145 = smul.addr %s144, 3
      %s146 = smul.addr %s145, 8
      %s147 = scalar_lea.vmem %s0, %s146
      %p148 = pneg %p35
      %p149 = pneg %p32
      %p150 = pneg %p56
      %p151 = pneg %p53
      %p152 = pneg %p77
      %p153 = pneg %p74
      %p154 = pneg %p103
      %p155 = pneg %p100
      %p156 = scmp.lt.s32.totalorder %s14, 1
      %s157 = scalar_select %p156, %s14, 1
      %s158 = smul.addr %s157, 4
      %s159 = scalar_lea.vmem %s3, %s158
      %p160 = scmp.lt.s32.totalorder %s14, 1
      %s161 = scalar_select %p160, %s14, 1
      %s162 = smul.addr %s161, 3
      %s163 = smul.addr %s162, 8
      %s164 = scalar_lea.vmem %s0, %s163
      %p165 = scmp.lt.s32.totalorder %s14, 1
      %s166 = scalar_select %p165, %s14, 1
      %s167 = smul.addr %s166, 4
      %s168 = scalar_lea.vmem %s3, %s167
      %v169 = vld [vmem:[%s164] ss:$2 sm:$0xff]
      %s170 = scalar_lea.vmem %s164, 1
      %v171 = vld [vmem:[%s170] ss:$2 sm:$0xff]
      %s172 = scalar_lea.vmem %s164, 2
      %v173 = vld [vmem:[%s172] ss:$2 sm:$0xff]
      %175 = vrot.lane.b32.xlu0 %v171, 8
      %v176 = vpop.permute.xlu0 %175
      %179 = vrot.lane.b32.xlu0 %v173, 16
      %v180 = vpop.permute.xlu0 %179
      %vm182 = vcmask 64512
      %v183 = vsel %vm182, %v169, %v176
      %vm184 = vcmask 130048
      %v185 = vsel %vm184, %v183, %v180
      %v186 = vld [vmem:[%s1] sm:$0xff]
      %v187 = vld [vmem:[%s1 + $0x8] sm:$0xff]
      %v188 = vld [vmem:[%s1 + $0x10] sm:$0xff]
      %v189 = vld [vmem:[%s2] sm:$0x1]
      %v191 = vlaneseq
      %v192 = vshrl.u32 %v191, 7
      %v193 = vsub.s32 0, %v192
      %v194 = vrot.slane %v189, %v193
      %vm196 = vcmask 195584
      %v198 = vsel %vm196, %v185, 0
      %200 = vmatprep.subr.mxu0 0.0
      %201 = vmatpush1.msra.mxu0 0.0
      %202 = vmatprep.subr.mxu0 0.0
      %203 = vmatpush1.msra.mxu0 0.0
      %204 = vmatprep.subr.mxu0 0.0
      %205 = vmatpush1.msra.mxu0 0.0
      %206 = vmatprep.subr.mxu0 0.0
      %207 = vmatpush1.msra.mxu0 0.0
      %208 = vmatprep.subr.mxu0 0.0
      %209 = vmatpush1.msra.mxu0 0.0
      %210 = vmatprep.subr.mxu0 0.0
      %211 = vmatpush1.msra.mxu0 0.0
      %212 = vmatprep.subr.mxu0 0.0
      %213 = vmatpush1.msra.mxu0 0.0
      %214 = vmatprep.subr.mxu0 0.0
      %215 = vmatpush1.msra.mxu0 0.0
      %216 = vmatprep.subr.mxu0 0.0
      %217 = vmatpush1.msra.mxu0 0.0
      %218 = vmatprep.subr.mxu0 0.0
      %219 = vmatpush1.msra.mxu0 0.0
      %220 = vmatprep.subr.mxu0 0.0
      %221 = vmatpush1.msra.mxu0 0.0
      %222 = vmatprep.subr.mxu0 0.0
      %223 = vmatpush1.msra.mxu0 0.0
      %224 = vmatprep.subr.mxu0 0.0
      %225 = vmatpush1.msra.mxu0 0.0
      %226 = vmatprep.subr.mxu0 0.0
      %227 = vmatpush1.msra.mxu0 %v188
      %228 = vmatprep.subr.mxu0 0.0
      %229 = vmatpush1.msra.mxu0 %v187
      %230 = vmatprep.subr.mxu0 0.0
      %231 = vmatpush1.msra.mxu0 %v186
      %232 = vmatprep.subr.mxu0 0.0
      %233 = vmatpush2.msra.mxu0 0.0
      %234 = vmatprep.subr.mxu0 0.0
      %235 = vmatpush2.msra.mxu0 0.0
      %236 = vmatprep.subr.mxu0 0.0
      %237 = vmatpush2.msra.mxu0 0.0
      %238 = vmatprep.subr.mxu0 0.0
      %239 = vmatpush2.msra.mxu0 0.0
      %240 = vmatprep.subr.mxu0 0.0
      %241 = vmatpush2.msra.mxu0 0.0
      %242 = vmatprep.subr.mxu0 0.0
      %243 = vmatpush2.msra.mxu0 0.0
      %244 = vmatprep.subr.mxu0 0.0
      %245 = vmatpush2.msra.mxu0 0.0
      %246 = vmatprep.subr.mxu0 0.0
      %247 = vmatpush2.msra.mxu0 0.0
      %248 = vmatprep.subr.mxu0 0.0
      %249 = vmatpush2.msra.mxu0 0.0
      %250 = vmatprep.subr.mxu0 0.0
      %251 = vmatpush2.msra.mxu0 0.0
      %252 = vmatprep.subr.mxu0 0.0
      %253 = vmatpush2.msra.mxu0 0.0
      %254 = vmatprep.subr.mxu0 0.0
      %255 = vmatpush2.msra.mxu0 0.0
      %256 = vmatprep.subr.mxu0 0.0
      %257 = vmatpush2.msra.mxu0 0.0
      %258 = vmatprep.subr.mxu0 0.0
      %259 = vmatpush2.msra.mxu0 0.0
      %260 = vmatprep.subr.mxu0 0.0
      %261 = vmatpush2.msra.mxu0 0.0
      %262 = vmatprep.subr.mxu0 0.0
      %263 = vmatpush2.msra.mxu0 0.0
      %264 = vmatprep.mubr.f32.mxu0 0.0
      %265 = vmatmul.mubr.f32.gmra.mxu0 %v198
      %v266 = vpop.f32.mrf.mxu0
      %v267 = vadd.f32 %v194, %v266
      %v268 = vpop.f32.mrf.mxu0
      %269 = vdwg.mxu0
      %vm270 = vcmp.gt.f32.partialorder %v267, 0.0
      %v271 = vmul.f32 %v267, 0.01
      %v272 = vsel %vm270, %v267, %v271
      %273 = vst.msk [vmem:[#allocation2] sm:$0xff] %vm184, %v272
      %v274 = vld [vmem:[#allocation2] ss:$2 sm:$0xf]
      %s275 = scalar_lea.vmem [#allocation2], 1
      %v276 = vld [vmem:[%s275] ss:$2 sm:$0xf]
      %v278 = vrot.slane %v276, 7
      %vm280 = vcmask 1040384
      %v281 = vsel %vm280, -inf, %v278
      %v282 = vmax.f32 %v281, %v274
      %v283 = vmax.f32 %v282, %v276
      %vm284 = vcmask 125952
      %285 = vst.msk [vmem:[%s168] sm:$0xf] %vm284, %v283
      %p286 = scmp.lt.s32.totalorder %s14, 1
      %s287 = scalar_select %p286, %s14, 1
      %s288 = smul.addr %s287, 4
      %s289 = scalar_lea.vmem %s3, %s288
      // Predicated region
      $region33: #{forward.6} parent=31 // pred_check
        %p290 = pneg %p100
      $region34: #{forward.6} parent=31 // pred_check_branch
        %292 = sbr.rel (%p290) target = $region36
      $region35: #{forward.6} parent=31 // pred_region
        _
      $region36: #{forward.6} parent=31 // pred_fallthru
        _
    $region32: #{forward.6} parent=5 // pred_fallthru
      _
    %p293 = scmp.le.s32.totalorder 2, %s9
    // Predicated region
    $region37: #{forward.6} parent=5 // pred_check
      %p294 = pneg %p293
    $region38: #{forward.6} parent=5 // pred_check_branch
      %296 = sbr.rel (%p294) target = $region40
    $region39: #{forward.6} parent=5 // pred_region
      %s297 = ssub.s32 %s9, 2
      // Predicated region
      $region41: #{forward.6} parent=39 // pred_check
        %p298 = pneg %p106
      $region42: #{forward.6} parent=39 // pred_check_branch
        %300 = sbr.rel (%p298) target = $region44
      $region43: #{forward.6} parent=39 // pred_region
        %p301 = scmp.lt.s32.totalorder %s15, 1
        %s302 = scalar_select %p301, %s15, 1
        %s303 = smul.addr %s302, 4
        %s304 = scalar_lea.vmem %s3, %s303
      $region44: #{forward.6} parent=39 // pred_fallthru
        _
    $region40: #{forward.6} parent=5 // pred_fallthru
      _
  $region6: #{forward.6} parent=0 // loop_footer
    %s13 = sadd.s32 1, %s9
  $region7: #{forward.6} parent=0 // loop_footer_branch
    %8 = sbr.rel target = $region3
  $region8: #{forward.6} parent=0 // loop_exit
    _

// kernel: forward.5
$region0: #{forward.5}
  #allocation0 [shape = 'u32[]', space=smem, size = 0x4, offset = 0x4, fixed_abs, tag = 'smem constant byte address 0x4 - core index']
  #allocation1 [shape = 'u32[144,128]{1,0:T(1,128)}', space=vmem, size = 0x12000, scoped, tag = 'internal scratch']
  #allocation2 [shape = 'f32[32,8]{1,0:T(8,128)}', space=vmem, size = 0x4000, scoped, tag = 'scratch operand']
  %s0 = inlined_call_operand.vmem [shape: f32[2,66,4], index: 0, kind: input, shape index: {}]
  %s1 = inlined_call_operand.vmem [shape: f32[12,8], index: 1, kind: input, shape index: {}]
  %s2 = inlined_call_operand.vmem [shape: f32[1,8], index: 2, kind: input, shape index: {}]
  %s3 = inlined_call_operand.vmem [shape: f32[2,16,8], index: 3, kind: output, shape index: {}]
  %s4 = sld [smem:[#allocation0]]
  $region45: #{forward.5} parent=0
    _
  %s6 = ssub.s32 1, %s4
  %s7 = scalar_select 0, %s6, %s4
  loop: start=0, step=1, limit=4
  $region2: #{forward.5} parent=0 // loop_pre_header
    _
  $region3: #{forward.5} parent=0 // loop_header
    %s9 = sphi 0, %s13
    %p10 = scmp.ge.s32.totalorder %s9, 4
    %s19 = sphi 0, %s21
    %s22 = sphi 0, %s19
    %s23 = sphi 0, %s22
    %s39 = sphi 0, %s23
    %s43 = sphi 0, %s43
    %s45 = sphi 0, %s43
    %s46 = sphi 0, %s45
    %s60 = sphi 0, %s46
    %s64 = sphi 0, %s64
    %s66 = sphi 0, %s64
    %s67 = sphi 0, %s66
    %s81 = sphi 0, %s67
    %s87 = sphi 0, %s89
    %s90 = sphi 0, %s87
    %s91 = sphi 0, %s90
    %s107 = sphi 0, %s91
  $region4: #{forward.5} parent=0 // loop_header_branch
    %12 = sbr.rel (%p10) target = $region8
  $region5: #{forward.5} parent=0 // loop_body
    %s14 = ssub.s32 %s9, 1
    %s15 = ssub.s32 %s9, 2
    %s16 = sadd.s32 %s9, 1
    %s17 = ssub.s32 %s9, %s16
    %p18 = scmp.eq.s32.totalorder %s17, 0
    %s20 = sadd.s32 %s19, 1
    %s21 = scalar_select %p18, %s19, %s20
    %p24 = pneg %p18
    %p25 = scmp.eq.s32.totalorder %s9, 1
    %p26 = por %p24, %p25
    %p27 = scmp.ne.s32.totalorder %s19, %s22
    %p28 = scmp.eq.s32.totalorder %s9, 0
    %p29 = por %p27, %p28
    %p30 = scmp.ne.s32.totalorder %s19, %s22
    %p31 = scmp.eq.s32.totalorder %s14, 1
    %p32 = por %p30, %p31
    %p33 = scmp.ne.s32.totalorder %s22, %s23
    %p34 = scmp.eq.s32.totalorder %s14, 0
    %p35 = por %p33, %p34
    %p36 = scmp.ne.s32.totalorder %s22, %s23
    %p37 = scmp.eq.s32.totalorder %s15, 1
    %p38 = por %p36, %p37
    %p40 = scmp.ne.s32.totalorder %s23, %s39
    %p41 = scmp.eq.s32.totalorder %s15, 0
    %p42 = por %p40, %p41
    %s44 = sadd.s32 %s43, 1
    %p47 = scmp.eq.s32.totalorder %s9, 1
    %p48 = scmp.ne.s32.totalorder %s43, %s45
    %p49 = scmp.eq.s32.totalorder %s9, 0
    %p50 = por %p48, %p49
    %p51 = scmp.ne.s32.totalorder %s43, %s45
    %p52 = scmp.eq.s32.totalorder %s14, 1
    %p53 = por %p51, %p52
    %p54 = scmp.ne.s32.totalorder %s45, %s46
    %p55 = scmp.eq.s32.totalorder %s14, 0
    %p56 = por %p54, %p55
    %p57 = scmp.ne.s32.totalorder %s45, %s46
    %p58 = scmp.eq.s32.totalorder %s15, 1
    %p59 = por %p57, %p58
    %p61 = scmp.ne.s32.totalorder %s46, %s60
    %p62 = scmp.eq.s32.totalorder %s15, 0
    %p63 = por %p61, %p62
    %s65 = sadd.s32 %s64, 1
    %p68 = scmp.eq.s32.totalorder %s9, 1
    %p69 = scmp.ne.s32.totalorder %s64, %s66
    %p70 = scmp.eq.s32.totalorder %s9, 0
    %p71 = por %p69, %p70
    %p72 = scmp.ne.s32.totalorder %s64, %s66
    %p73 = scmp.eq.s32.totalorder %s14, 1
    %p74 = por %p72, %p73
    %p75 = scmp.ne.s32.totalorder %s66, %s67
    %p76 = scmp.eq.s32.totalorder %s14, 0
    %p77 = por %p75, %p76
    %p78 = scmp.ne.s32.totalorder %s66, %s67
    %p79 = scmp.eq.s32.totalorder %s15, 1
    %p80 = por %p78, %p79
    %p82 = scmp.ne.s32.totalorder %s67, %s81
    %p83 = scmp.eq.s32.totalorder %s15, 0
    %p84 = por %p82, %p83
    %s85 = ssub.s32 %s9, %s16
    %p86 = scmp.eq.s32.totalorder %s85, 0
    %s88 = sadd.s32 %s87, 1
    %s89 = scalar_select %p86, %s87, %s88
    %p92 = pneg %p86
    %p93 = scmp.eq.s32.totalorder %s9, 1
    %p94 = por %p92, %p93
    %p95 = scmp.ne.s32.totalorder %s87, %s90
    %p96 = scmp.eq.s32.totalorder %s9, 0
    %p97 = por %p95, %p96
    %p98 = scmp.ne.s32.totalorder %s87, %s90
    %p99 = scmp.eq.s32.totalorder %s14, 1
    %p100 = por %p98, %p99
    %p101 = scmp.ne.s32.totalorder %s90, %s91
    %p102 = scmp.eq.s32.totalorder %s14, 0
    %p103 = por %p101, %p102
    %p104 = scmp.ne.s32.totalorder %s90, %s91
    %p105 = scmp.eq.s32.totalorder %s15, 1
    %p106 = por %p104, %p105
    %p108 = scmp.ne.s32.totalorder %s91, %s107
    %p109 = scmp.eq.s32.totalorder %s15, 0
    %p110 = por %p108, %p109
    %p111 = scmp.le.s32.totalorder 1, %s9
    %p112 = scmp.lt.s32.totalorder %s9, 3
    %p113 = pnand %p111, %p112
    %p114 = pneg %p113
    // Predicated region
    $region9: #{forward.5} parent=5 // pred_check
      _
    $region10: #{forward.5} parent=5 // pred_check_branch
      %116 = sbr.rel (%p113) target = $region12
    $region11: #{forward.5} parent=5 // pred_region
      %s117 = ssub.s32 %s9, 1
      // Predicated region
      $region13: #{forward.5} parent=11 // pred_check
        %p118 = pneg %p56
      $region14: #{forward.5} parent=11 // pred_check_branch
        %120 = sbr.rel (%p118) target = $region16
      $region15: #{forward.5} parent=11 // pred_region
        _
      $region16: #{forward.5} parent=11 // pred_fallthru
        _
      // Predicated region
      $region17: #{forward.5} parent=11 // pred_check
        %p121 = pneg %p77
      $region18: #{forward.5} parent=11 // pred_check_branch
        %123 = sbr.rel (%p121) target = $region20
      $region19: #{forward.5} parent=11 // pred_region
        _
      $region20: #{forward.5} parent=11 // pred_fallthru
        _
    $region12: #{forward.5} parent=5 // pred_fallthru
      _
    %p124 = scmp.lt.s32.totalorder %s9, 2
    // Predicated region
    $region21: #{forward.5} parent=5 // pred_check
      %p125 = pneg %p124
    $region22: #{forward.5} parent=5 // pred_check_branch
      %127 = sbr.rel (%p125) target = $region24
    $region23: #{forward.5} parent=5 // pred_region
      // Predicated region
      $region25: #{forward.5} parent=23 // pred_check
        %p128 = pneg %p29
      $region26: #{forward.5} parent=23 // pred_check_branch
        %130 = sbr.rel (%p128) target = $region28
      $region27: #{forward.5} parent=23 // pred_region
        %p131 = scmp.lt.s32.totalorder %s9, 1
        %s132 = scalar_select %p131, %s9, 1
        %s133 = smul.addr %s132, 9
        %s134 = smul.addr %s133, 8
        %s135 = scalar_lea.vmem %s0, %s134
      $region28: #{forward.5} parent=23 // pred_fallthru
        _
    $region24: #{forward.5} parent=5 // pred_fallthru
      _
    %p136 = scmp.le.s32.totalorder 1, %s9
    %p137 = scmp.lt.s32.totalorder %s9, 3
    %p138 = pnand %p136, %p137
    %p139 = pneg %p138
    // Predicated region
    $region29: #{forward.5} parent=5 // pred_check
      _
    $region30: #{forward.5} parent=5 // pred_check_branch
      %141 = sbr.rel (%p138) target = $region32
    $region31: #{forward.5} parent=5 // pred_region
      %s142 = ssub.s32 %s9, 1
      %p143 = scmp.lt.s32.totalorder %s14, 1
      %s144 = scalar_select %p143, %s14, 1
      %s145 = smul.addr %s144, 9
      %s146 = smul.addr %s145, 8
      %s147 = scalar_lea.vmem %s0, %s146
      %p148 = pneg %p35
      %p149 = pneg %p32
      %p150 = pneg %p56
      %p151 = pneg %p53
      %p152 = pneg %p77
      %p153 = pneg %p74
      %p154 = pneg %p103
      %p155 = pneg %p100
      %p156 = scmp.lt.s32.totalorder %s14, 1
      %s157 = scalar_select %p156, %s14, 1
      %s158 = smul.addr %s157, 2
      %s159 = smul.addr %s158, 8
      %s160 = scalar_lea.vmem %s3, %s159
      %p161 = scmp.lt.s32.totalorder %s14, 1
      %s162 = scalar_select %p161, %s14, 1
      %s163 = smul.addr %s162, 9
      %s164 = smul.addr %s163, 8
      %s165 = scalar_lea.vmem %s0, %s164
      %p166 = scmp.lt.s32.totalorder %s14, 1
      %s167 = scalar_select %p166, %s14, 1
      %s168 = smul.addr %s167, 2
      %s169 = smul.addr %s168, 8
      %s170 = scalar_lea.vmem %s3, %s169
      %v171 = vld [vmem:[%s165] ss:$2 sm:$0xff]
      %s172 = scalar_lea.vmem %s165, 16
      %v173 = vld [vmem:[%s172] ss:$2 sm:$0xff]
      %s174 = scalar_lea.vmem %s165, 32
      %v175 = vld [vmem:[%s174] ss:$2 sm:$0xff]
      %s176 = scalar_lea.vmem %s165, 48
      %v177 = vld [vmem:[%s176] ss:$2 sm:$0xff]
      %s178 = scalar_lea.vmem %s165, 1
      %v179 = vld [vmem:[%s178] ss:$2 sm:$0xff]
      %s180 = scalar_lea.vmem %s165, 17
      %v181 = vld [vmem:[%s180] ss:$2 sm:$0xff]
      %s182 = scalar_lea.vmem %s165, 33
      %v183 = vld [vmem:[%s182] ss:$2 sm:$0xff]
      %s184 = scalar_lea.vmem %s165, 49
      %v185 = vld [vmem:[%s184] ss:$2 sm:$0xff]
      %s186 = scalar_lea.vmem %s165, 2
      %v187 = vld [vmem:[%s186] ss:$2 sm:$0xff]
      %s188 = scalar_lea.vmem %s165, 18
      %v189 = vld [vmem:[%s188] ss:$2 sm:$0xff]
      %s190 = scalar_lea.vmem %s165, 34
      %v191 = vld [vmem:[%s190] ss:$2 sm:$0xff]
      %s192 = scalar_lea.vmem %s165, 50
      %v193 = vld [vmem:[%s192] ss:$2 sm:$0xff]
      %198 = vrot.lane.b32.xlu0 %v179, 4
      %v199 = vpop.permute.xlu0 %198
      %200 = vrot.lane.b32.xlu0 %v181, 4
      %v201 = vpop.permute.xlu0 %200
      %202 = vrot.lane.b32.xlu0 %v183, 4
      %v203 = vpop.permute.xlu0 %202
      %204 = vrot.lane.b32.xlu0 %v185, 4
      %v205 = vpop.permute.xlu0 %204
      %214 = vrot.lane.b32.xlu0 %v187, 8
      %v215 = vpop.permute.xlu0 %214
      %216 = vrot.lane.b32.xlu0 %v189, 8
      %v217 = vpop.permute.xlu0 %216
      %218 = vrot.lane.b32.xlu0 %v191, 8
      %v219 = vpop.permute.xlu0 %218
      %220 = vrot.lane.b32.xlu0 %v193, 8
      %v221 = vpop.permute.xlu0 %220
      %vm226 = vcmask 31744
      %v227 = vsel %vm226, %v171, %v199
      %v228 = vsel %vm226, %v173, %v201
      %v229 = vsel %vm226, %v175, %v203
      %v230 = vsel %vm226, %v177, %v205
      %vm231 = vcmask 64512
      %v232 = vsel %vm231, %v227, %v215
      %v233 = vsel %vm231, %v228, %v217
      %v234 = vsel %vm231, %v229, %v219
      %v235 = vsel %vm231, %v230, %v221
      %v236 = vld [vmem:[%s1] sm:$0xff]
      %v237 = vld [vmem:[%s1 + $0x8] sm:$0xf]
      %v238 = vld [vmem:[%s2] sm:$0x1]
      %v240 = vlaneseq
      %v241 = vshrl.u32 %v240, 7
      %v242 = vsub.s32 0, %v241
      %v243 = vrot.slane %v238, %v242
      %vm245 = vcmask 97280
      %v247 = vsel %vm245, %v232, 0
      %v250 = vsel %vm245, %v233, 0
      %v253 = vsel %vm245, %v234, 0
      %v256 = vsel %vm245, %v235, 0
      %vm258 = vcmask 1043456
      %v260 = vsel %vm258, %v237, 0
      %262 = vmatprep.subr.mxu0 0.0
      %263 = vmatpush1.msra.mxu0 0.0
      %264 = vmatprep.subr.mxu0 0.0
      %265 = vmatpush1.msra.mxu0 0.0
      %266 = vmatprep.subr.mxu0 0.0
      %267 = vmatpush1.msra.mxu0 0.0
      %268 = vmatprep.subr.mxu0 0.0
      %269 = vmatpush1.msra.mxu0 0.0
      %270 = vmatprep.subr.mxu0 0.0
      %271 = vmatpush1.msra.mxu0 0.0
      %272 = vmatprep.subr.mxu0 0.0
      %273 = vmatpush1.msra.mxu0 0.0
      %274 = vmatprep.subr.mxu0 0.0
      %275 = vmatpush1.msra.mxu0 0.0
      %276 = vmatprep.subr.mxu0 0.0
      %277 = vmatpush1.msra.mxu0 0.0
      %278 = vmatprep.subr.mxu0 0.0
      %279 = vmatpush1.msra.mxu0 0.0
      %280 = vmatprep.subr.mxu0 0.0
      %281 = vmatpush1.msra.mxu0 0.0
      %282 = vmatprep.subr.mxu0 0.0
      %283 = vmatpush1.msra.mxu0 0.0
      %284 = vmatprep.subr.mxu0 0.0
      %285 = vmatpush1.msra.mxu0 0.0
      %286 = vmatprep.subr.mxu0 0.0
      %287 = vmatpush1.msra.mxu0 0.0
      %288 = vmatprep.subr.mxu0 0.0
      %289 = vmatpush1.msra.mxu0 0.0
      %290 = vmatprep.subr.mxu0 0.0
      %291 = vmatpush1.msra.mxu0 %v260
      %292 = vmatprep.subr.mxu0 0.0
      %293 = vmatpush1.msra.mxu0 %v236
      %294 = vmatprep.subr.mxu0 0.0
      %295 = vmatpush2.msra.mxu0 0.0
      %296 = vmatprep.subr.mxu0 0.0
      %297 = vmatpush2.msra.mxu0 0.0
      %298 = vmatprep.subr.mxu0 0.0
      %299 = vmatpush2.msra.mxu0 0.0
      %300 = vmatprep.subr.mxu0 0.0
      %301 = vmatpush2.msra.mxu0 0.0
      %302 = vmatprep.subr.mxu0 0.0
      %303 = vmatpush2.msra.mxu0 0.0
      %304 = vmatprep.subr.mxu0 0.0
      %305 = vmatpush2.msra.mxu0 0.0
      %306 = vmatprep.subr.mxu0 0.0
      %307 = vmatpush2.msra.mxu0 0.0
      %308 = vmatprep.subr.mxu0 0.0
      %309 = vmatpush2.msra.mxu0 0.0
      %310 = vmatprep.subr.mxu0 0.0
      %311 = vmatpush2.msra.mxu0 0.0
      %312 = vmatprep.subr.mxu0 0.0
      %313 = vmatpush2.msra.mxu0 0.0
      %314 = vmatprep.subr.mxu0 0.0
      %315 = vmatpush2.msra.mxu0 0.0
      %316 = vmatprep.subr.mxu0 0.0
      %317 = vmatpush2.msra.mxu0 0.0
      %318 = vmatprep.subr.mxu0 0.0
      %319 = vmatpush2.msra.mxu0 0.0
      %320 = vmatprep.subr.mxu0 0.0
      %321 = vmatpush2.msra.mxu0 0.0
      %322 = vmatprep.subr.mxu0 0.0
      %323 = vmatpush2.msra.mxu0 0.0
      %324 = vmatprep.subr.mxu0 0.0
      %325 = vmatpush2.msra.mxu0 0.0
      %326 = vmatprep.mubr.f32.mxu0 0.0
      %327 = vmatmul.mubr.f32.gmra.mxu0 %v247
      %v328 = vpop.f32.mrf.mxu0
      %v329 = vadd.f32 %v243, %v328
      %v330 = vpop.f32.mrf.mxu0
      %331 = vmatprep.mubr.f32.mxu0 0.0
      %332 = vmatmul.mubr.f32.gmra.mxu0 %v250
      %v333 = vpop.f32.mrf.mxu0
      %v334 = vadd.f32 %v243, %v333
      %v335 = vpop.f32.mrf.mxu0
      %336 = vmatprep.mubr.f32.mxu0 0.0
      %337 = vmatmul.mubr.f32.gmra.mxu0 %v253
      %v338 = vpop.f32.mrf.mxu0
      %v339 = vadd.f32 %v243, %v338
      %v340 = vpop.f32.mrf.mxu0
      %341 = vmatprep.mubr.f32.mxu0 0.0
      %342 = vmatmul.mubr.f32.gmra.mxu0 %v256
      %v343 = vpop.f32.mrf.mxu0
      %v344 = vadd.f32 %v243, %v343
      %v345 = vpop.f32.mrf.mxu0
      %346 = vdwg.mxu0
      %vm347 = vcmp.gt.f32.partialorder %v329, 0.0
      %vm348 = vcmp.gt.f32.partialorder %v334, 0.0
      %vm349 = vcmp.gt.f32.partialorder %v339, 0.0
      %vm350 = vcmp.gt.f32.partialorder %v344, 0.0
      %v351 = vmul.f32 %v329, 0.01
      %v352 = vmul.f32 %v334, 0.01
      %v353 = vmul.f32 %v339, 0.01
      %v354 = vmul.f32 %v344, 0.01
      %v355 = vsel %vm347, %v329, %v351
      %v356 = vsel %vm348, %v334, %v352
      %v357 = vsel %vm349, %v339, %v353
      %v358 = vsel %vm350, %v344, %v354
      %359 = vst.msk [vmem:[#allocation2] sm:$0xff] %vm231, %v355
      %360 = vst.msk [vmem:[#allocation2 + $0x8] sm:$0xff] %vm231, %v356
      %361 = vst.msk [vmem:[#allocation2 + $0x10] sm:$0xff] %vm231, %v357
      %362 = vst.msk [vmem:[#allocation2 + $0x18] sm:$0xff] %vm231, %v358
      %v363 = vld [vmem:[#allocation2] ss:$2 sm:$0xff]
      %s364 = scalar_lea.vmem [#allocation2], 16
      %v365 = vld [vmem:[%s364] ss:$2 sm:$0xff]
      %s366 = scalar_lea.vmem [#allocation2], 1
      %v367 = vld [vmem:[%s366] ss:$2 sm:$0xff]
      %s368 = scalar_lea.vmem [#allocation2], 17
      %v369 = vld [vmem:[%s368] ss:$2 sm:$0xff]
      %vm372 = vcmask 1040384
      %v373 = vrot.slane %v367, 7
      %v374 = vrot.slane %v369, 7
      %v375 = vsel %vm372, %v373, %v374
      %v378 = vsel %vm372, -inf, %v373
      %v379 = vmax.f32 %v378, %v363
      %v380 = vmax.f32 %v375, %v365
      %v381 = vmax.f32 %v379, %v367
      %v382 = vmax.f32 %v380, %v369
      %383 = vst.msk [vmem:[%s170] sm:$0xff] %vm231, %v381
      %384 = vst.msk [vmem:[%s170 + $0x8] sm:$0xff] %vm231, %v382
      %p385 = scmp.lt.s32.totalorder %s14, 1
      %s386 = scalar_select %p385, %s14, 1
      %s387 = smul.addr %s386, 2
      %s388 = smul.addr %s387, 8
      %s389 = scalar_lea.vmem %s3, %s388
      // Predicated region
      $region33: #{forward.5} parent=31 // pred_check
        %p390 = pneg %p100
      $region34: #{forward.5} parent=31 // pred_check_branch
        %392 = sbr.rel (%p390) target = $region36
      $region35: #{forward.5} parent=31 // pred_region
        _
      $region36: #{forward.5} parent=31 // pred_fallthru
        _
    $region32: #{forward.5} parent=5 // pred_fallthru
      _
    %p393 = scmp.le.s32.totalorder 2, %s9
    // Predicated region
    $region37: #{forward.5} parent=5 // pred_check
      %p394 = pneg %p393
    $region38: #{forward.5} parent=5 // pred_check_branch
      %396 = sbr.rel (%p394) target = $region40
    $region39: #{forward.5} parent=5 // pred_region
      %s397 = ssub.s32 %s9, 2
      // Predicated region
      $region41: #{forward.5} parent=39 // pred_check
        %p398 = pneg %p106
      $region42: #{forward.5} parent=39 // pred_check_branch
        %400 = sbr.rel (%p398) target = $region44
      $region43: #{forward.5} parent=39 // pred_region
        %p401 = scmp.lt.s32.totalorder %s15, 1
        %s402 = scalar_select %p401, %s15, 1
        %s403 = smul.addr %s402, 2
        %s404 = smul.addr %s403, 8
        %s405 = scalar_lea.vmem %s3, %s404
      $region44: #{forward.5} parent=39 // pred_fallthru
        _
    $region40: #{forward.5} parent=5 // pred_fallthru
      _
  $region6: #{forward.5} parent=0 // loop_footer
    %s13 = sadd.s32 1, %s9
  $region7: #{forward.5} parent=0 // loop_footer_branch
    %8 = sbr.rel target = $region3
  $region8: #{forward.5} parent=0 // loop_exit
    _

// kernel: forward.8
$region0: #{forward.8}
  #allocation0 [shape = 'u32[]', space=smem, size = 0x4, offset = 0x4, fixed_abs, tag = 'smem constant byte address 0x4 - core index']
  #allocation1 [shape = 'u32[144,128]{1,0:T(1,128)}', space=vmem, size = 0x12000, scoped, tag = 'internal scratch']
  %s0 = inlined_call_operand.vmem [shape: f32[2,4,16], index: 0, kind: input, shape index: {}]
  %s1 = inlined_call_operand.vmem [shape: f32[16,32], index: 1, kind: input, shape index: {}]
  %s2 = inlined_call_operand.vmem [shape: f32[1,32], index: 2, kind: input, shape index: {}]
  %s3 = inlined_call_operand.vmem [shape: f32[2,4,32], index: 3, kind: output, shape index: {}]
  %s4 = sld [smem:[#allocation0]]
  $region45: #{forward.8} parent=0
    _
  %s6 = ssub.s32 1, %s4
  %s7 = scalar_select 0, %s6, %s4
  loop: start=0, step=1, limit=4
  $region2: #{forward.8} parent=0 // loop_pre_header
    _
  $region3: #{forward.8} parent=0 // loop_header
    %s9 = sphi 0, %s13
    %p10 = scmp.ge.s32.totalorder %s9, 4
    %s19 = sphi 0, %s21
    %s22 = sphi 0, %s19
    %s23 = sphi 0, %s22
    %s39 = sphi 0, %s23
    %s43 = sphi 0, %s43
    %s45 = sphi 0, %s43
    %s46 = sphi 0, %s45
    %s60 = sphi 0, %s46
    %s64 = sphi 0, %s64
    %s66 = sphi 0, %s64
    %s67 = sphi 0, %s66
    %s81 = sphi 0, %s67
    %s87 = sphi 0, %s89
    %s90 = sphi 0, %s87
    %s91 = sphi 0, %s90
    %s107 = sphi 0, %s91
  $region4: #{forward.8} parent=0 // loop_header_branch
    %12 = sbr.rel (%p10) target = $region8
  $region5: #{forward.8} parent=0 // loop_body
    %s14 = ssub.s32 %s9, 1
    %s15 = ssub.s32 %s9, 2
    %s16 = sadd.s32 %s9, 1
    %s17 = ssub.s32 %s9, %s16
    %p18 = scmp.eq.s32.totalorder %s17, 0
    %s20 = sadd.s32 %s19, 1
    %s21 = scalar_select %p18, %s19, %s20
    %p24 = pneg %p18
    %p25 = scmp.eq.s32.totalorder %s9, 1
    %p26 = por %p24, %p25
    %p27 = scmp.ne.s32.totalorder %s19, %s22
    %p28 = scmp.eq.s32.totalorder %s9, 0
    %p29 = por %p27, %p28
    %p30 = scmp.ne.s32.totalorder %s19, %s22
    %p31 = scmp.eq.s32.totalorder %s14, 1
    %p32 = por %p30, %p31
    %p33 = scmp.ne.s32.totalorder %s22, %s23
    %p34 = scmp.eq.s32.totalorder %s14, 0
    %p35 = por %p33, %p34
    %p36 = scmp.ne.s32.totalorder %s22, %s23
    %p37 = scmp.eq.s32.totalorder %s15, 1
    %p38 = por %p36, %p37
    %p40 = scmp.ne.s32.totalorder %s23, %s39
    %p41 = scmp.eq.s32.totalorder %s15, 0
    %p42 = por %p40, %p41
    %s44 = sadd.s32 %s43, 1
    %p47 = scmp.eq.s32.totalorder %s9, 1
    %p48 = scmp.ne.s32.totalorder %s43, %s45
    %p49 = scmp.eq.s32.totalorder %s9, 0
    %p50 = por %p48, %p49
    %p51 = scmp.ne.s32.totalorder %s43, %s45
    %p52 = scmp.eq.s32.totalorder %s14, 1
    %p53 = por %p51, %p52
    %p54 = scmp.ne.s32.totalorder %s45, %s46
    %p55 = scmp.eq.s32.totalorder %s14, 0
    %p56 = por %p54, %p55
    %p57 = scmp.ne.s32.totalorder %s45, %s46
    %p58 = scmp.eq.s32.totalorder %s15, 1
    %p59 = por %p57, %p58
    %p61 = scmp.ne.s32.totalorder %s46, %s60
    %p62 = scmp.eq.s32.totalorder %s15, 0
    %p63 = por %p61, %p62
    %s65 = sadd.s32 %s64, 1
    %p68 = scmp.eq.s32.totalorder %s9, 1
    %p69 = scmp.ne.s32.totalorder %s64, %s66
    %p70 = scmp.eq.s32.totalorder %s9, 0
    %p71 = por %p69, %p70
    %p72 = scmp.ne.s32.totalorder %s64, %s66
    %p73 = scmp.eq.s32.totalorder %s14, 1
    %p74 = por %p72, %p73
    %p75 = scmp.ne.s32.totalorder %s66, %s67
    %p76 = scmp.eq.s32.totalorder %s14, 0
    %p77 = por %p75, %p76
    %p78 = scmp.ne.s32.totalorder %s66, %s67
    %p79 = scmp.eq.s32.totalorder %s15, 1
    %p80 = por %p78, %p79
    %p82 = scmp.ne.s32.totalorder %s67, %s81
    %p83 = scmp.eq.s32.totalorder %s15, 0
    %p84 = por %p82, %p83
    %s85 = ssub.s32 %s9, %s16
    %p86 = scmp.eq.s32.totalorder %s85, 0
    %s88 = sadd.s32 %s87, 1
    %s89 = scalar_select %p86, %s87, %s88
    %p92 = pneg %p86
    %p93 = scmp.eq.s32.totalorder %s9, 1
    %p94 = por %p92, %p93
    %p95 = scmp.ne.s32.totalorder %s87, %s90
    %p96 = scmp.eq.s32.totalorder %s9, 0
    %p97 = por %p95, %p96
    %p98 = scmp.ne.s32.totalorder %s87, %s90
    %p99 = scmp.eq.s32.totalorder %s14, 1
    %p100 = por %p98, %p99
    %p101 = scmp.ne.s32.totalorder %s90, %s91
    %p102 = scmp.eq.s32.totalorder %s14, 0
    %p103 = por %p101, %p102
    %p104 = scmp.ne.s32.totalorder %s90, %s91
    %p105 = scmp.eq.s32.totalorder %s15, 1
    %p106 = por %p104, %p105
    %p108 = scmp.ne.s32.totalorder %s91, %s107
    %p109 = scmp.eq.s32.totalorder %s15, 0
    %p110 = por %p108, %p109
    %p111 = scmp.le.s32.totalorder 1, %s9
    %p112 = scmp.lt.s32.totalorder %s9, 3
    %p113 = pnand %p111, %p112
    %p114 = pneg %p113
    // Predicated region
    $region9: #{forward.8} parent=5 // pred_check
      _
    $region10: #{forward.8} parent=5 // pred_check_branch
      %116 = sbr.rel (%p113) target = $region12
    $region11: #{forward.8} parent=5 // pred_region
      %s117 = ssub.s32 %s9, 1
      // Predicated region
      $region13: #{forward.8} parent=11 // pred_check
        %p118 = pneg %p56
      $region14: #{forward.8} parent=11 // pred_check_branch
        %120 = sbr.rel (%p118) target = $region16
      $region15: #{forward.8} parent=11 // pred_region
        _
      $region16: #{forward.8} parent=11 // pred_fallthru
        _
      // Predicated region
      $region17: #{forward.8} parent=11 // pred_check
        %p121 = pneg %p77
      $region18: #{forward.8} parent=11 // pred_check_branch
        %123 = sbr.rel (%p121) target = $region20
      $region19: #{forward.8} parent=11 // pred_region
        _
      $region20: #{forward.8} parent=11 // pred_fallthru
        _
    $region12: #{forward.8} parent=5 // pred_fallthru
      _
    %p124 = scmp.lt.s32.totalorder %s9, 2
    // Predicated region
    $region21: #{forward.8} parent=5 // pred_check
      %p125 = pneg %p124
    $region22: #{forward.8} parent=5 // pred_check_branch
      %127 = sbr.rel (%p125) target = $region24
    $region23: #{forward.8} parent=5 // pred_region
      // Predicated region
      $region25: #{forward.8} parent=23 // pred_check
        %p128 = pneg %p29
      $region26: #{forward.8} parent=23 // pred_check_branch
        %130 = sbr.rel (%p128) target = $region28
      $region27: #{forward.8} parent=23 // pred_region
        %p131 = scmp.lt.s32.totalorder %s9, 1
        %s132 = scalar_select %p131, %s9, 1
        %s133 = smul.addr %s132, 4
        %s134 = scalar_lea.vmem %s0, %s133
      $region28: #{forward.8} parent=23 // pred_fallthru
        _
    $region24: #{forward.8} parent=5 // pred_fallthru
      _
    %p135 = scmp.le.s32.totalorder 1, %s9
    %p136 = scmp.lt.s32.totalorder %s9, 3
    %p137 = pnand %p135, %p136
    %p138 = pneg %p137
    // Predicated region
    $region29: #{forward.8} parent=5 // pred_check
      _
    $region30: #{forward.8} parent=5 // pred_check_branch
      %140 = sbr.rel (%p137) target = $region32
    $region31: #{forward.8} parent=5 // pred_region
      %s141 = ssub.s32 %s9, 1
      %p142 = scmp.lt.s32.totalorder %s14, 1
      %s143 = scalar_select %p142, %s14, 1
      %s144 = smul.addr %s143, 4
      %s145 = scalar_lea.vmem %s0, %s144
      %p146 = pneg %p35
      %p147 = pneg %p32
      %p148 = pneg %p56
      %p149 = pneg %p53
      %p150 = pneg %p77
      %p151 = pneg %p74
      %p152 = pneg %p103
      %p153 = pneg %p100
      %p154 = scmp.lt.s32.totalorder %s14, 1
      %s155 = scalar_select %p154, %s14, 1
      %s156 = smul.addr %s155, 4
      %s157 = scalar_lea.vmem %s3, %s156
      %p158 = scmp.lt.s32.totalorder %s14, 1
      %s159 = scalar_select %p158, %s14, 1
      %s160 = smul.addr %s159, 4
      %s161 = scalar_lea.vmem %s0, %s160
      %p162 = scmp.lt.s32.totalorder %s14, 1
      %s163 = scalar_select %p162, %s14, 1
      %s164 = smul.addr %s163, 4
      %s165 = scalar_lea.vmem %s3, %s164
      %v166 = vld [vmem:[%s161] sm:$0xf]
      %v167 = vld [vmem:[%s1] sm:$0xff]
      %v168 = vld [vmem:[%s1 + $0x8] sm:$0xff]
      %v169 = vld [vmem:[%s2] sm:$0x1]
      %v171 = vlaneseq
      %v172 = vshrl.u32 %v171, 7
      %v173 = vsub.s32 0, %v172
      %v174 = vrot.slane %v169, %v173
      %vm176 = vcmask 130048
      %v178 = vsel %vm176, %v166, 0
      %180 = vmatprep.subr.mxu0 0.0
      %181 = vmatpush1.msra.mxu0 0.0
      %182 = vmatprep.subr.mxu0 0.0
      %183 = vmatpush1.msra.mxu0 0.0
      %184 = vmatprep.subr.mxu0 0.0
      %185 = vmatpush1.msra.mxu0 0.0
      %186 = vmatprep.subr.mxu0 0.0
      %187 = vmatpush1.msra.mxu0 0.0
      %188 = vmatprep.subr.mxu0 0.0
      %189 = vmatpush1.msra.mxu0 0.0
      %190 = vmatprep.subr.mxu0 0.0
      %191 = vmatpush1.msra.mxu0 0.0
      %192 = vmatprep.subr.mxu0 0.0
      %193 = vmatpush1.msra.mxu0 0.0
      %194 = vmatprep.subr.mxu0 0.0
      %195 = vmatpush1.msra.mxu0 0.0
      %196 = vmatprep.subr.mxu0 0.0
      %197 = vmatpush1.msra.mxu0 0.0
      %198 = vmatprep.subr.mxu0 0.0
      %199 = vmatpush1.msra.mxu0 0.0
      %200 = vmatprep.subr.mxu0 0.0
      %201 = vmatpush1.msra.mxu0 0.0
      %202 = vmatprep.subr.mxu0 0.0
      %203 = vmatpush1.msra.mxu0 0.0
      %204 = vmatprep.subr.mxu0 0.0
      %205 = vmatpush1.msra.mxu0 0.0
      %206 = vmatprep.subr.mxu0 0.0
      %207 = vmatpush1.msra.mxu0 0.0
      %208 = vmatprep.subr.mxu0 0.0
      %209 = vmatpush1.msra.mxu0 %v168
      %210 = vmatprep.subr.mxu0 0.0
      %211 = vmatpush1.msra.mxu0 %v167
      %212 = vmatprep.subr.mxu0 0.0
      %213 = vmatpush2.msra.mxu0 0.0
      %214 = vmatprep.subr.mxu0 0.0
      %215 = vmatpush2.msra.mxu0 0.0
      %216 = vmatprep.subr.mxu0 0.0
      %217 = vmatpush2.msra.mxu0 0.0
      %218 = vmatprep.subr.mxu0 0.0
      %219 = vmatpush2.msra.mxu0 0.0
      %220 = vmatprep.subr.mxu0 0.0
      %221 = vmatpush2.msra.mxu0 0.0
      %222 = vmatprep.subr.mxu0 0.0
      %223 = vmatpush2.msra.mxu0 0.0
      %224 = vmatprep.subr.mxu0 0.0
      %225 = vmatpush2.msra.mxu0 0.0
      %226 = vmatprep.subr.mxu0 0.0
      %227 = vmatpush2.msra.mxu0 0.0
      %228 = vmatprep.subr.mxu0 0.0
      %229 = vmatpush2.msra.mxu0 0.0
      %230 = vmatprep.subr.mxu0 0.0
      %231 = vmatpush2.msra.mxu0 0.0
      %232 = vmatprep.subr.mxu0 0.0
      %233 = vmatpush2.msra.mxu0 0.0
      %234 = vmatprep.subr.mxu0 0.0
      %235 = vmatpush2.msra.mxu0 0.0
      %236 = vmatprep.subr.mxu0 0.0
      %237 = vmatpush2.msra.mxu0 0.0
      %238 = vmatprep.subr.mxu0 0.0
      %239 = vmatpush2.msra.mxu0 0.0
      %240 = vmatprep.subr.mxu0 0.0
      %241 = vmatpush2.msra.mxu0 0.0
      %242 = vmatprep.subr.mxu0 0.0
      %243 = vmatpush2.msra.mxu0 0.0
      %244 = vmatprep.mubr.f32.mxu0 0.0
      %245 = vmatmul.mubr.f32.gmra.mxu0 %v178
      %v246 = vpop.f32.mrf.mxu0
      %v247 = vadd.f32 %v174, %v246
      %v248 = vpop.f32.mrf.mxu0
      %249 = vdwg.mxu0
      %vm250 = vcmp.gt.f32.partialorder %v247, 0.0
      %v251 = vmul.f32 %v247, 0.01
      %v252 = vsel %vm250, %v247, %v251
      %vm253 = vcmask 257024
      %254 = vst.msk [vmem:[%s165] sm:$0xf] %vm253, %v252
      %p255 = scmp.lt.s32.totalorder %s14, 1
      %s256 = scalar_select %p255, %s14, 1
      %s257 = smul.addr %s256, 4
      %s258 = scalar_lea.vmem %s3, %s257
      // Predicated region
      $region33: #{forward.8} parent=31 // pred_check
        %p259 = pneg %p100
      $region34: #{forward.8} parent=31 // pred_check_branch
        %261 = sbr.rel (%p259) target = $region36
      $region35: #{forward.8} parent=31 // pred_region
        _
      $region36: #{forward.8} parent=31 // pred_fallthru
        _
    $region32: #{forward.8} parent=5 // pred_fallthru
      _
    %p262 = scmp.le.s32.totalorder 2, %s9
    // Predicated region
    $region37: #{forward.8} parent=5 // pred_check
      %p263 = pneg %p262
    $region38: #{forward.8} parent=5 // pred_check_branch
      %265 = sbr.rel (%p263) target = $region40
    $region39: #{forward.8} parent=5 // pred_region
      %s266 = ssub.s32 %s9, 2
      // Predicated region
      $region41: #{forward.8} parent=39 // pred_check
        %p267 = pneg %p106
      $region42: #{forward.8} parent=39 // pred_check_branch
        %269 = sbr.rel (%p267) target = $region44
      $region43: #{forward.8} parent=39 // pred_region
        %p270 = scmp.lt.s32.totalorder %s15, 1
        %s271 = scalar_select %p270, %s15, 1
        %s272 = smul.addr %s271, 4
        %s273 = scalar_lea.vmem %s3, %s272
      $region44: #{forward.8} parent=39 // pred_fallthru
        _
    $region40: #{forward.8} parent=5 // pred_fallthru
      _
  $region6: #{forward.8} parent=0 // loop_footer
    %s13 = sadd.s32 1, %s9
  $region7: #{forward.8} parent=0 // loop_footer_branch
    %8 = sbr.rel target = $region3
  $region8: #{forward.8} parent=0 // loop_exit
    _

// kernel: forward.9
$region0: #{forward.9}
  #allocation0 [shape = 'u32[]', space=smem, size = 0x4, offset = 0x4, fixed_abs, tag = 'smem constant byte address 0x4 - core index']
  #allocation1 [shape = 'u32[144,128]{1,0:T(1,128)}', space=vmem, size = 0x12000, scoped, tag = 'internal scratch']
  %s0 = inlined_call_operand.vmem [shape: f32[2,15,8], index: 0, kind: input, shape index: {}]
  %s1 = inlined_call_operand.vmem [shape: f32[8,16], index: 1, kind: input, shape index: {}]
  %s2 = inlined_call_operand.vmem [shape: f32[1,16], index: 2, kind: input, shape index: {}]
  %s3 = inlined_call_operand.vmem [shape: f32[2,15,16], index: 3, kind: output, shape index: {}]
  %s4 = sld [smem:[#allocation0]]
  $region45: #{forward.9} parent=0
    _
  %s6 = ssub.s32 1, %s4
  %s7 = scalar_select 0, %s6, %s4
  loop: start=0, step=1, limit=4
  $region2: #{forward.9} parent=0 // loop_pre_header
    _
  $region3: #{forward.9} parent=0 // loop_header
    %s9 = sphi 0, %s13
    %p10 = scmp.ge.s32.totalorder %s9, 4
    %s19 = sphi 0, %s21
    %s22 = sphi 0, %s19
    %s23 = sphi 0, %s22
    %s39 = sphi 0, %s23
    %s43 = sphi 0, %s43
    %s45 = sphi 0, %s43
    %s46 = sphi 0, %s45
    %s60 = sphi 0, %s46
    %s64 = sphi 0, %s64
    %s66 = sphi 0, %s64
    %s67 = sphi 0, %s66
    %s81 = sphi 0, %s67
    %s87 = sphi 0, %s89
    %s90 = sphi 0, %s87
    %s91 = sphi 0, %s90
    %s107 = sphi 0, %s91
  $region4: #{forward.9} parent=0 // loop_header_branch
    %12 = sbr.rel (%p10) target = $region8
  $region5: #{forward.9} parent=0 // loop_body
    %s14 = ssub.s32 %s9, 1
    %s15 = ssub.s32 %s9, 2
    %s16 = sadd.s32 %s9, 1
    %s17 = ssub.s32 %s9, %s16
    %p18 = scmp.eq.s32.totalorder %s17, 0
    %s20 = sadd.s32 %s19, 1
    %s21 = scalar_select %p18, %s19, %s20
    %p24 = pneg %p18
    %p25 = scmp.eq.s32.totalorder %s9, 1
    %p26 = por %p24, %p25
    %p27 = scmp.ne.s32.totalorder %s19, %s22
    %p28 = scmp.eq.s32.totalorder %s9, 0
    %p29 = por %p27, %p28
    %p30 = scmp.ne.s32.totalorder %s19, %s22
    %p31 = scmp.eq.s32.totalorder %s14, 1
    %p32 = por %p30, %p31
    %p33 = scmp.ne.s32.totalorder %s22, %s23
    %p34 = scmp.eq.s32.totalorder %s14, 0
    %p35 = por %p33, %p34
    %p36 = scmp.ne.s32.totalorder %s22, %s23
    %p37 = scmp.eq.s32.totalorder %s15, 1
    %p38 = por %p36, %p37
    %p40 = scmp.ne.s32.totalorder %s23, %s39
    %p41 = scmp.eq.s32.totalorder %s15, 0
    %p42 = por %p40, %p41
    %s44 = sadd.s32 %s43, 1
    %p47 = scmp.eq.s32.totalorder %s9, 1
    %p48 = scmp.ne.s32.totalorder %s43, %s45
    %p49 = scmp.eq.s32.totalorder %s9, 0
    %p50 = por %p48, %p49
    %p51 = scmp.ne.s32.totalorder %s43, %s45
    %p52 = scmp.eq.s32.totalorder %s14, 1
    %p53 = por %p51, %p52
    %p54 = scmp.ne.s32.totalorder %s45, %s46
    %p55 = scmp.eq.s32.totalorder %s14, 0
    %p56 = por %p54, %p55
    %p57 = scmp.ne.s32.totalorder %s45, %s46
    %p58 = scmp.eq.s32.totalorder %s15, 1
    %p59 = por %p57, %p58
    %p61 = scmp.ne.s32.totalorder %s46, %s60
    %p62 = scmp.eq.s32.totalorder %s15, 0
    %p63 = por %p61, %p62
    %s65 = sadd.s32 %s64, 1
    %p68 = scmp.eq.s32.totalorder %s9, 1
    %p69 = scmp.ne.s32.totalorder %s64, %s66
    %p70 = scmp.eq.s32.totalorder %s9, 0
    %p71 = por %p69, %p70
    %p72 = scmp.ne.s32.totalorder %s64, %s66
    %p73 = scmp.eq.s32.totalorder %s14, 1
    %p74 = por %p72, %p73
    %p75 = scmp.ne.s32.totalorder %s66, %s67
    %p76 = scmp.eq.s32.totalorder %s14, 0
    %p77 = por %p75, %p76
    %p78 = scmp.ne.s32.totalorder %s66, %s67
    %p79 = scmp.eq.s32.totalorder %s15, 1
    %p80 = por %p78, %p79
    %p82 = scmp.ne.s32.totalorder %s67, %s81
    %p83 = scmp.eq.s32.totalorder %s15, 0
    %p84 = por %p82, %p83
    %s85 = ssub.s32 %s9, %s16
    %p86 = scmp.eq.s32.totalorder %s85, 0
    %s88 = sadd.s32 %s87, 1
    %s89 = scalar_select %p86, %s87, %s88
    %p92 = pneg %p86
    %p93 = scmp.eq.s32.totalorder %s9, 1
    %p94 = por %p92, %p93
    %p95 = scmp.ne.s32.totalorder %s87, %s90
    %p96 = scmp.eq.s32.totalorder %s9, 0
    %p97 = por %p95, %p96
    %p98 = scmp.ne.s32.totalorder %s87, %s90
    %p99 = scmp.eq.s32.totalorder %s14, 1
    %p100 = por %p98, %p99
    %p101 = scmp.ne.s32.totalorder %s90, %s91
    %p102 = scmp.eq.s32.totalorder %s14, 0
    %p103 = por %p101, %p102
    %p104 = scmp.ne.s32.totalorder %s90, %s91
    %p105 = scmp.eq.s32.totalorder %s15, 1
    %p106 = por %p104, %p105
    %p108 = scmp.ne.s32.totalorder %s91, %s107
    %p109 = scmp.eq.s32.totalorder %s15, 0
    %p110 = por %p108, %p109
    %p111 = scmp.le.s32.totalorder 1, %s9
    %p112 = scmp.lt.s32.totalorder %s9, 3
    %p113 = pnand %p111, %p112
    %p114 = pneg %p113
    // Predicated region
    $region9: #{forward.9} parent=5 // pred_check
      _
    $region10: #{forward.9} parent=5 // pred_check_branch
      %116 = sbr.rel (%p113) target = $region12
    $region11: #{forward.9} parent=5 // pred_region
      %s117 = ssub.s32 %s9, 1
      // Predicated region
      $region13: #{forward.9} parent=11 // pred_check
        %p118 = pneg %p56
      $region14: #{forward.9} parent=11 // pred_check_branch
        %120 = sbr.rel (%p118) target = $region16
      $region15: #{forward.9} parent=11 // pred_region
        _
      $region16: #{forward.9} parent=11 // pred_fallthru
        _
      // Predicated region
      $region17: #{forward.9} parent=11 // pred_check
        %p121 = pneg %p77
      $region18: #{forward.9} parent=11 // pred_check_branch
        %123 = sbr.rel (%p121) target = $region20
      $region19: #{forward.9} parent=11 // pred_region
        _
      $region20: #{forward.9} parent=11 // pred_fallthru
        _
    $region12: #{forward.9} parent=5 // pred_fallthru
      _
    %p124 = scmp.lt.s32.totalorder %s9, 2
    // Predicated region
    $region21: #{forward.9} parent=5 // pred_check
      %p125 = pneg %p124
    $region22: #{forward.9} parent=5 // pred_check_branch
      %127 = sbr.rel (%p125) target = $region24
    $region23: #{forward.9} parent=5 // pred_region
      // Predicated region
      $region25: #{forward.9} parent=23 // pred_check
        %p128 = pneg %p29
      $region26: #{forward.9} parent=23 // pred_check_branch
        %130 = sbr.rel (%p128) target = $region28
      $region27: #{forward.9} parent=23 // pred_region
        %p131 = scmp.lt.s32.totalorder %s9, 1
        %s132 = scalar_select %p131, %s9, 1
        %s133 = smul.addr %s132, 2
        %s134 = smul.addr %s133, 8
        %s135 = scalar_lea.vmem %s0, %s134
      $region28: #{forward.9} parent=23 // pred_fallthru
        _
    $region24: #{forward.9} parent=5 // pred_fallthru
      _
    %p136 = scmp.le.s32.totalorder 1, %s9
    %p137 = scmp.lt.s32.totalorder %s9, 3
    %p138 = pnand %p136, %p137
    %p139 = pneg %p138
    // Predicated region
    $region29: #{forward.9} parent=5 // pred_check
      _
    $region30: #{forward.9} parent=5 // pred_check_branch
      %141 = sbr.rel (%p138) target = $region32
    $region31: #{forward.9} parent=5 // pred_region
      %s142 = ssub.s32 %s9, 1
      %p143 = scmp.lt.s32.totalorder %s14, 1
      %s144 = scalar_select %p143, %s14, 1
      %s145 = smul.addr %s144, 2
      %s146 = smul.addr %s145, 8
      %s147 = scalar_lea.vmem %s0, %s146
      %p148 = pneg %p35
      %p149 = pneg %p32
      %p150 = pneg %p56
      %p151 = pneg %p53
      %p152 = pneg %p77
      %p153 = pneg %p74
      %p154 = pneg %p103
      %p155 = pneg %p100
      %p156 = scmp.lt.s32.totalorder %s14, 1
      %s157 = scalar_select %p156, %s14, 1
      %s158 = smul.addr %s157, 2
      %s159 = smul.addr %s158, 8
      %s160 = scalar_lea.vmem %s3, %s159
      %p161 = scmp.lt.s32.totalorder %s14, 1
      %s162 = scalar_select %p161, %s14, 1
      %s163 = smul.addr %s162, 2
      %s164 = smul.addr %s163, 8
      %s165 = scalar_lea.vmem %s0, %s164
      %p166 = scmp.lt.s32.totalorder %s14, 1
      %s167 = scalar_select %p166, %s14, 1
      %s168 = smul.addr %s167, 2
      %s169 = smul.addr %s168, 8
      %s170 = scalar_lea.vmem %s3, %s169
      %v171 = vld [vmem:[%s165] sm:$0xff]
      %v172 = vld [vmem:[%s165 + $0x8] sm:$0x7f]
      %v173 = vld [vmem:[%s1] sm:$0xff]
      %v174 = vld [vmem:[%s2] sm:$0x1]
      %v176 = vlaneseq
      %v177 = vshrl.u32 %v176, 7
      %v178 = vsub.s32 0, %v177
      %v179 = vrot.slane %v174, %v178
      %vm181 = vcmask 64512
      %v183 = vsel %vm181, %v171, 0
      %v186 = vsel %vm181, %v172, 0
      %188 = vmatprep.subr.mxu0 0.0
      %189 = vmatpush1.msra.mxu0 0.0
      %190 = vmatprep.subr.mxu0 0.0
      %191 = vmatpush1.msra.mxu0 0.0
      %192 = vmatprep.subr.mxu0 0.0
      %193 = vmatpush1.msra.mxu0 0.0
      %194 = vmatprep.subr.mxu0 0.0
      %195 = vmatpush1.msra.mxu0 0.0
      %196 = vmatprep.subr.mxu0 0.0
      %197 = vmatpush1.msra.mxu0 0.0
      %198 = vmatprep.subr.mxu0 0.0
      %199 = vmatpush1.msra.mxu0 0.0
      %200 = vmatprep.subr.mxu0 0.0
      %201 = vmatpush1.msra.mxu0 0.0
      %202 = vmatprep.subr.mxu0 0.0
      %203 = vmatpush1.msra.mxu0 0.0
      %204 = vmatprep.subr.mxu0 0.0
      %205 = vmatpush1.msra.mxu0 0.0
      %206 = vmatprep.subr.mxu0 0.0
      %207 = vmatpush1.msra.mxu0 0.0
      %208 = vmatprep.subr.mxu0 0.0
      %209 = vmatpush1.msra.mxu0 0.0
      %210 = vmatprep.subr.mxu0 0.0
      %211 = vmatpush1.msra.mxu0 0.0
      %212 = vmatprep.subr.mxu0 0.0
      %213 = vmatpush1.msra.mxu0 0.0
      %214 = vmatprep.subr.mxu0 0.0
      %215 = vmatpush1.msra.mxu0 0.0
      %216 = vmatprep.subr.mxu0 0.0
      %217 = vmatpush1.msra.mxu0 0.0
      %218 = vmatprep.subr.mxu0 0.0
      %219 = vmatpush1.msra.mxu0 %v173
      %220 = vmatprep.subr.mxu0 0.0
      %221 = vmatpush2.msra.mxu0 0.0
      %222 = vmatprep.subr.mxu0 0.0
      %223 = vmatpush2.msra.mxu0 0.0
      %224 = vmatprep.subr.mxu0 0.0
      %225 = vmatpush2.msra.mxu0 0.0
      %226 = vmatprep.subr.mxu0 0.0
      %227 = vmatpush2.msra.mxu0 0.0
      %228 = vmatprep.subr.mxu0 0.0
      %229 = vmatpush2.msra.mxu0 0.0
      %230 = vmatprep.subr.mxu0 0.0
      %231 = vmatpush2.msra.mxu0 0.0
      %232 = vmatprep.subr.mxu0 0.0
      %233 = vmatpush2.msra.mxu0 0.0
      %234 = vmatprep.subr.mxu0 0.0
      %235 = vmatpush2.msra.mxu0 0.0
      %236 = vmatprep.subr.mxu0 0.0
      %237 = vmatpush2.msra.mxu0 0.0
      %238 = vmatprep.subr.mxu0 0.0
      %239 = vmatpush2.msra.mxu0 0.0
      %240 = vmatprep.subr.mxu0 0.0
      %241 = vmatpush2.msra.mxu0 0.0
      %242 = vmatprep.subr.mxu0 0.0
      %243 = vmatpush2.msra.mxu0 0.0
      %244 = vmatprep.subr.mxu0 0.0
      %245 = vmatpush2.msra.mxu0 0.0
      %246 = vmatprep.subr.mxu0 0.0
      %247 = vmatpush2.msra.mxu0 0.0
      %248 = vmatprep.subr.mxu0 0.0
      %249 = vmatpush2.msra.mxu0 0.0
      %250 = vmatprep.subr.mxu0 0.0
      %251 = vmatpush2.msra.mxu0 0.0
      %252 = vmatprep.mubr.f32.mxu0 0.0
      %253 = vmatmul.mubr.f32.gmra.mxu0 %v183
      %v254 = vpop.f32.mrf.mxu0
      %v255 = vadd.f32 %v179, %v254
      %v256 = vpop.f32.mrf.mxu0
      %257 = vmatprep.mubr.f32.mxu0 0.0
      %258 = vmatmul.mubr.f32.gmra.mxu0 %v186
      %v259 = vpop.f32.mrf.mxu0
      %v260 = vadd.f32 %v179, %v259
      %v261 = vpop.f32.mrf.mxu0
      %262 = vdwg.mxu0
      %vm263 = vcmp.gt.f32.partialorder %v255, 0.0
      %vm264 = vcmp.gt.f32.partialorder %v260, 0.0
      %v265 = vmul.f32 %v255, 0.01
      %v266 = vmul.f32 %v260, 0.01
      %v267 = vsel %vm263, %v255, %v265
      %v268 = vsel %vm264, %v260, %v266
      %vm269 = vcmask 130048
      %270 = vst.msk [vmem:[%s170] sm:$0xff] %vm269, %v267
      %vm271 = vcmask 129024
      %272 = vst.msk [vmem:[%s170 + $0x8] sm:$0x7f] %vm271, %v268
      %p273 = scmp.lt.s32.totalorder %s14, 1
      %s274 = scalar_select %p273, %s14, 1
      %s275 = smul.addr %s274, 2
      %s276 = smul.addr %s275, 8
      %s277 = scalar_lea.vmem %s3, %s276
      // Predicated region
      $region33: #{forward.9} parent=31 // pred_check
        %p278 = pneg %p100
      $region34: #{forward.9} parent=31 // pred_check_branch
        %280 = sbr.rel (%p278) target = $region36
      $region35: #{forward.9} parent=31 // pred_region
        _
      $region36: #{forward.9} parent=31 // pred_fallthru
        _
    $region32: #{forward.9} parent=5 // pred_fallthru
      _
    %p281 = scmp.le.s32.totalorder 2, %s9
    // Predicated region
    $region37: #{forward.9} parent=5 // pred_check
      %p282 = pneg %p281
    $region38: #{forward.9} parent=5 // pred_check_branch
      %284 = sbr.rel (%p282) target = $region40
    $region39: #{forward.9} parent=5 // pred_region
      %s285 = ssub.s32 %s9, 2
      // Predicated region
      $region41: #{forward.9} parent=39 // pred_check
        %p286 = pneg %p106
      $region42: #{forward.9} parent=39 // pred_check_branch
        %288 = sbr.rel (%p286) target = $region44
      $region43: #{forward.9} parent=39 // pred_region
        %p289 = scmp.lt.s32.totalorder %s15, 1
        %s290 = scalar_select %p289, %s15, 1
        %s291 = smul.addr %s290, 2
        %s292 = smul.addr %s291, 8
        %s293 = scalar_lea.vmem %s3, %s292
      $region44: #{forward.9} parent=39 // pred_fallthru
        _
    $region40: #{forward.9} parent=5 // pred_fallthru
      _
  $region6: #{forward.9} parent=0 // loop_footer
    %s13 = sadd.s32 1, %s9
  $region7: #{forward.9} parent=0 // loop_footer_branch
    %8 = sbr.rel target = $region3
  $region8: #{forward.9} parent=0 // loop_exit
    _

</llo_original>
